<compile_context>
chip_gen: v5e
topology: v5e:2x2
jax: 0.10.0
libtpu: 0.0.40
codegen_flags: <defaults>
</compile_context>

<pallas_src>
import functools
import math

import jax
import jax.numpy as jnp
from jax.experimental import pallas as pl
from jax.experimental.pallas import tpu as pltpu


# ------------------------------ tiling helper --------------------------------

def _tile(dim, desired, align):
    """Largest power-of-two tile <= desired that divides dim (down to align),
    else the full dim (full-dim blocks are always legal)."""
    t = desired
    while t >= align:
        if dim % t == 0:
            return t
        t //= 2
    return dim


# ------------------------------ matmul kernels --------------------------------

def _gelu_new(h):
    # GPT-2 "gelu_new" (tanh approximation), computed on the f32 accumulator.
    c = math.sqrt(2.0 / math.pi)
    return 0.5 * h * (1.0 + jnp.tanh(c * (h + 0.044715 * h * h * h)))


def _matmul_kernel(x_ref, w_ref, b_ref, o_ref, acc_ref, *, activation):
    """o = act(x @ w + b); K-tiled with f32 accumulator, epilogue on last K step."""
    k = pl.program_id(2)

    @pl.when(k == 0)
    def _init():
        acc_ref[...] = jnp.zeros_like(acc_ref)

    acc_ref[...] += jnp.dot(x_ref[...], w_ref[...],
                            preferred_element_type=jnp.float32)

    @pl.when(k == pl.num_programs(2) - 1)
    def _finalize():
        h = acc_ref[...] + b_ref[...]
        if activation == "gelu":
            h = _gelu_new(h)
        o_ref[...] = h.astype(o_ref.dtype)


def _matmul_res_ln_kernel(x_ref, w_ref, b_ref, r_ref, g_ref, bt_ref,
                          xo_ref, ho_ref, acc_ref, *, eps):
    """y = x @ w + b + residual ; outputs (y_f32, LayerNorm(y)_bf16).
    N is not tiled so LayerNorm over the feature dim can live in the epilogue."""
    k = pl.program_id(1)

    @pl.when(k == 0)
    def _init():
        acc_ref[...] = jnp.zeros_like(acc_ref)

    acc_ref[...] += jnp.dot(x_ref[...], w_ref[...],
                            preferred_element_type=jnp.float32)

    @pl.when(k == pl.num_programs(1) - 1)
    def _finalize():
        y = acc_ref[...] + b_ref[...] + r_ref[...]
        xo_ref[...] = y
        mu = jnp.mean(y, axis=-1, keepdims=True)
        var = jnp.mean((y - mu) ** 2, axis=-1, keepdims=True)
        inv = jax.lax.rsqrt(var + eps)
        ho_ref[...] = ((y - mu) * inv * g_ref[...] + bt_ref[...]).astype(ho_ref.dtype)


def _attn_kernel(qkv_ref, o_ref, *, n_head, d_model, scale):
    """Causal multi-head attention for one batch element.
    qkv_ref: (1, S, 3*D) bf16 (lane-dense), o_ref: (1, S, D) bf16."""
    S = qkv_ref.shape[1]
    Dh = d_model // n_head
    row = jax.lax.broadcasted_iota(jnp.int32, (S, S), 0)
    col = jax.lax.broadcasted_iota(jnp.int32, (S, S), 1)
    # Additive causal bias, computed once and shared by all heads.
    mask_bias = jnp.where(col <= row, 0.0, -1e30).astype(jnp.float32)
    # TODO(synk): for long sequences convert to a flash-style online-softmax
    # with a KV grid axis; here the full SxS score matrix fits in VMEM.
    outs = []
    for h in range(n_head):  # static unroll over heads
        lo = h * Dh
        q = qkv_ref[0, :, lo:lo + Dh] * scale                      # scale folded into q
        kk = qkv_ref[0, :, d_model + lo:d_model + lo + Dh]
        v = qkv_ref[0, :, 2 * d_model + lo:2 * d_model + lo + Dh]
        # contract last dims directly (no explicit k.T materialization)
        s = jax.lax.dot_general(q, kk, (((1,), (1,)), ((), ())),
                                preferred_element_type=jnp.float32)  # (S, S)
        s = s + mask_bias
        m = jnp.max(s, axis=-1, keepdims=True)
        p = jnp.exp(s - m)
        l = jnp.sum(p, axis=-1, keepdims=True)
        p = p * pl.reciprocal(l, approx=True)
        o = jnp.dot(p.astype(v.dtype), v, preferred_element_type=jnp.float32)
        outs.append(o)
    # Single full-lane-width store (no per-head masked partial stores).
    o_ref[0, :, :] = jnp.concatenate(outs, axis=-1).astype(o_ref.dtype)


# ------------------------------ Pallas wrappers --------------------------------

def linear(x, w, b, *, activation=None, out_dtype=jnp.bfloat16):
    M, K = x.shape
    _, N = w.shape
    tm = _tile(M, 512, 8)
    tk = _tile(K, 512, 128)
    tn = _tile(N, 256, 128)
    kernel = functools.partial(_matmul_kernel, activation=activation)
    return pl.pallas_call(
        kernel,
        out_shape=jax.ShapeDtypeStruct((M, N), out_dtype),
        grid=(M // tm, N // tn, K // tk),
        in_specs=[
            pl.BlockSpec((tm, tk), lambda i, j, k: (i, k)),
            pl.BlockSpec((tk, tn), lambda i, j, k: (k, j)),
            pl.BlockSpec((1, tn), lambda i, j, k: (0, j)),
        ],
        out_specs=pl.BlockSpec((tm, tn), lambda i, j, k: (i, j)),
        scratch_shapes=[pltpu.VMEM((tm, tn), jnp.float32)],
        compiler_params=pltpu.CompilerParams(
            dimension_semantics=("parallel", "parallel", "arbitrary")),
    )(x.astype(jnp.bfloat16), w.astype(jnp.bfloat16),
      b.reshape(1, N).astype(jnp.float32))


def linear_residual_ln(x, w, b, residual, gamma, beta, *, eps=1e-5):
    M, K = x.shape
    _, N = w.shape
    tm = _tile(M, 256, 8)
    tk = _tile(K, 512, 128)
    kernel = functools.partial(_matmul_res_ln_kernel, eps=eps)
    return pl.pallas_call(
        kernel,
        out_shape=(jax.ShapeDtypeStruct((M, N), jnp.float32),
                   jax.ShapeDtypeStruct((M, N), jnp.bfloat16)),
        grid=(M // tm, K // tk),
        in_specs=[
            pl.BlockSpec((tm, tk), lambda i, k: (i, k)),
            pl.BlockSpec((tk, N), lambda i, k: (k, 0)),
            pl.BlockSpec((1, N), lambda i, k: (0, 0)),
            pl.BlockSpec((tm, N), lambda i, k: (i, 0)),
            pl.BlockSpec((1, N), lambda i, k: (0, 0)),
            pl.BlockSpec((1, N), lambda i, k: (0, 0)),
        ],
        out_specs=(pl.BlockSpec((tm, N), lambda i, k: (i, 0)),
                   pl.BlockSpec((tm, N), lambda i, k: (i, 0))),
        scratch_shapes=[pltpu.VMEM((tm, N), jnp.float32)],
        compiler_params=pltpu.CompilerParams(
            dimension_semantics=("parallel", "arbitrary")),
    )(x.astype(jnp.bfloat16), w.astype(jnp.bfloat16),
      b.reshape(1, N).astype(jnp.float32),
      residual.astype(jnp.float32),
      gamma.reshape(1, N).astype(jnp.float32),
      beta.reshape(1, N).astype(jnp.float32))


def causal_attention(qkv, *, n_head):
    # qkv: (B, S, 3*D) bf16 — consumed directly from the fused QKV projection.
    B, S, threeD = qkv.shape
    D = threeD // 3
    Dh = D // n_head
    kernel = functools.partial(_attn_kernel, n_head=n_head, d_model=D,
                               scale=1.0 / math.sqrt(Dh))
    return pl.pallas_call(
        kernel,
        out_shape=jax.ShapeDtypeStruct((B, S, D), jnp.bfloat16),
        grid=(B,),
        in_specs=[pl.BlockSpec((1, S, threeD), lambda b: (b, 0, 0))],
        out_specs=pl.BlockSpec((1, S, D), lambda b: (b, 0, 0)),
        compiler_params=pltpu.CompilerParams(dimension_semantics=("parallel",)),
    )(qkv.astype(jnp.bfloat16))


# ------------------------------ model definition -------------------------------

def init_params(key, n_dims_obs, n_positions, n_embd, n_layer, n_head):
    def normal(k, shape, std=0.02):
        return std * jax.random.normal(k, shape, dtype=jnp.float32)

    keys = jax.random.split(key, 3 + 4 * n_layer)
    ki = iter(keys)
    params = {
        "read_in_w": normal(next(ki), (n_dims_obs, n_embd)),
        "read_in_b": jnp.zeros((n_embd,), jnp.float32),
        "wpe": normal(next(ki), (n_positions, n_embd), std=0.01),
        "read_out_w": normal(next(ki), (n_embd, n_dims_obs)),
        "read_out_b": jnp.zeros((n_dims_obs,), jnp.float32),
        "lnf_g": jnp.ones((n_embd,), jnp.float32),
        "lnf_b": jnp.zeros((n_embd,), jnp.float32),
        "blocks": [],
    }
    for _ in range(n_layer):
        params["blocks"].append({
            "ln1_g": jnp.ones((n_embd,), jnp.float32),
            "ln1_b": jnp.zeros((n_embd,), jnp.float32),
            "attn_w": normal(next(ki), (n_embd, 3 * n_embd)),
            "attn_b": jnp.zeros((3 * n_embd,), jnp.float32),
            "proj_w": normal(next(ki), (n_embd, n_embd)),
            "proj_b": jnp.zeros((n_embd,), jnp.float32),
            "ln2_g": jnp.ones((n_embd,), jnp.float32),
            "ln2_b": jnp.zeros((n_embd,), jnp.float32),
            "fc_w": normal(next(ki), (n_embd, 4 * n_embd)),
            "fc_b": jnp.zeros((4 * n_embd,), jnp.float32),
            "mlp_proj_w": normal(next(ki), (4 * n_embd, n_embd)),
            "mlp_proj_b": jnp.zeros((n_embd,), jnp.float32),
        })
    return params


def gpt_forward(params, ys, *, n_head):
    # ys: (B, S, n_dims_obs) float32
    B, S, Do = ys.shape
    D = params["wpe"].shape[1]
    blocks = params["blocks"]
    n_layer = len(blocks)

    ys2d = ys.reshape(B * S, Do)
    # wpe add is fused into the read_in epilogue (as the "residual" operand).
    pos = jnp.broadcast_to(params["wpe"][:S][None], (B, S, D)).reshape(B * S, D)

    # read_in + position embedding + block-0 LN1: one fused kernel.
    x, h = linear_residual_ln(ys2d, params["read_in_w"], params["read_in_b"],
                              pos, blocks[0]["ln1_g"], blocks[0]["ln1_b"])
    # dropout p=0.0 -> identity

    for i, blk in enumerate(blocks):
        # --- attention sub-block ---
        qkv = linear(h, blk["attn_w"], blk["attn_b"])                 # (B*S, 3D) bf16
        attn = causal_attention(qkv.reshape(B, S, 3 * D), n_head=n_head)
        # attn output proj + residual add + LN2: one fused kernel.
        x, h = linear_residual_ln(attn.reshape(B * S, D), blk["proj_w"],
                                  blk["proj_b"], x, blk["ln2_g"], blk["ln2_b"])
        # --- MLP sub-block ---
        m = linear(h, blk["fc_w"], blk["fc_b"], activation="gelu")     # (B*S, 4D) bf16
        # mlp proj + residual add + next block's LN1 (or final ln_f): one fused kernel.
        if i + 1 < n_layer:
            ng, nb = blocks[i + 1]["ln1_g"], blocks[i + 1]["ln1_b"]
        else:
            ng, nb = params["lnf_g"], params["lnf_b"]
        x, h = linear_residual_ln(m, blk["mlp_proj_w"], blk["mlp_proj_b"],
                                  x, ng, nb)

    out = linear(h, params["read_out_w"], params["read_out_b"],
                 out_dtype=jnp.float32)
    return out.reshape(B, S, Do)


# ------------------------------ pure-JAX reference ------------------------------

def gpt_forward_ref(params, ys, *, n_head):
    B, S, Do = ys.shape
    D = params["wpe"].shape[1]

    def ln(x, g, b):
        mu = x.mean(-1, keepdims=True)
        var = ((x - mu) ** 2).mean(-1, keepdims=True)
        return (x - mu) * jax.lax.rsqrt(var + 1e-5) * g + b

    x = ys @ params["read_in_w"] + params["read_in_b"]
    x = x + params["wpe"][:S][None]
    for blk in params["blocks"]:
        h = ln(x, blk["ln1_g"], blk["ln1_b"])
        qkv = h @ blk["attn_w"] + blk["attn_b"]
        q, k, v = jnp.split(qkv, 3, axis=-1)

        def heads(t):
            return t.reshape(B, S, n_head, D // n_head).transpose(0, 2, 1, 3)

        q, k, v = heads(q), heads(k), heads(v)
        s = (q @ k.transpose(0, 1, 3, 2)) / math.sqrt(D // n_head)
        s = jnp.where(jnp.tril(jnp.ones((S, S), bool)), s, -1e30)
        p = jax.nn.softmax(s, axis=-1)
        a = (p @ v).transpose(0, 2, 1, 3).reshape(B, S, D)
        x = x + (a @ blk["proj_w"] + blk["proj_b"])
        h2 = ln(x, blk["ln2_g"], blk["ln2_b"])
        m = _gelu_new(h2 @ blk["fc_w"] + blk["fc_b"])
        x = x + (m @ blk["mlp_proj_w"] + blk["mlp_proj_b"])
    x = ln(x, params["lnf_g"], params["lnf_b"])
    return x @ params["read_out_w"] + params["read_out_b"]


# ----------------------------------- main ---------------------------------------

if __name__ == "__main__":
    # small GPT2Config-consistent shapes
    n_dims_obs, n_positions, n_embd, n_layer, n_head = 8, 16, 32, 2, 4
    B, S = 2, 8

    key = jax.random.PRNGKey(0)
    pkey, xkey = jax.random.split(key)
    params = init_params(pkey, n_dims_obs, n_positions, n_embd, n_layer, n_head)
    ys = jax.random.normal(xkey, (B, S, n_dims_obs), dtype=jnp.float32)

    # TODO(synk): the eval branch's numpy<->torch device shuttling has no Pallas
    # equivalent; inference semantics (the math) are implemented identically.
    fwd = jax.jit(functools.partial(gpt_forward, n_head=n_head))
    pred = fwd(params, ys)
    jax.block_until_ready(pred)

    ref = gpt_forward_ref(params, ys, n_head=n_head)
    err = float(jnp.max(jnp.abs(pred - ref)))

    assert pred.shape == (B, S, n_dims_obs)
    assert pred.dtype == jnp.float32
    assert err < 5e-2, f"max abs error vs reference: {err}"
    print("KERNEL_OK")
</pallas_src>

<mosaic_0001>
module attributes {stable_mosaic.version = 11 : i64} {
  func.func @_matmul_res_ln_kernel(%arg0: i32, %arg1: i32, %arg2: memref<16x8xbf16, #tpu.memory_space<vmem>>, %arg3: memref<8x32xbf16, #tpu.memory_space<vmem>>, %arg4: memref<1x32xf32, #tpu.memory_space<vmem>>, %arg5: memref<16x32xf32, #tpu.memory_space<vmem>>, %arg6: memref<1x32xf32, #tpu.memory_space<vmem>>, %arg7: memref<1x32xf32, #tpu.memory_space<vmem>>, %arg8: memref<16x32xf32, #tpu.memory_space<vmem>>, %arg9: memref<16x32xbf16, #tpu.memory_space<vmem>>, %arg10: memref<16x32xf32, #tpu.memory_space<vmem>>) attributes {dimension_semantics = [#tpu.dimension_semantics<parallel>, #tpu.dimension_semantics<arbitrary>], iteration_bounds = array<i64: 1, 1>, scalar_prefetch = 0 : i64, scratch_operands = 1 : i64, tpu.core_type = #tpu.core_type<tc>, window_params = [{transform_indices = @transform_0, window_bounds = array<i64: 16, 8>}, {transform_indices = @transform_1, window_bounds = array<i64: 8, 32>}, {pipeline_mode = #tpu.pipeline_mode<synchronous>, transform_indices = @transform_2, window_bounds = array<i64: 1, 32>}, {transform_indices = @transform_3, window_bounds = array<i64: 16, 32>}, {pipeline_mode = #tpu.pipeline_mode<synchronous>, transform_indices = @transform_4, window_bounds = array<i64: 1, 32>}, {pipeline_mode = #tpu.pipeline_mode<synchronous>, transform_indices = @transform_5, window_bounds = array<i64: 1, 32>}, {transform_indices = @transform_6, window_bounds = array<i64: 16, 32>}, {transform_indices = @transform_7, window_bounds = array<i64: 16, 32>}]} {
    %c0_i32 = arith.constant 0 : i32
    %0 = arith.cmpi eq, %arg1, %c0_i32 : i32
    %1 = arith.extui %0 : i1 to i32
    %c0_i32_0 = arith.constant 0 : i32
    %2 = arith.cmpi ne, %1, %c0_i32_0 : i32
    scf.if %2 {
      %cst_10 = arith.constant 0.000000e+00 : f32
      %12 = vector.broadcast %cst_10 : f32 to vector<16x32xf32>
      %c0_11 = arith.constant 0 : index
      %c0_12 = arith.constant 0 : index
      %13 = vector.load %arg10[%c0_11, %c0_12] : memref<16x32xf32, #tpu.memory_space<vmem>>, vector<16x32xf32>
      tpu.vector_store %arg10[%c0_11, %c0_12], %12 {strides = array<i32>} : memref<16x32xf32, #tpu.memory_space<vmem>>, vector<16x32xf32>,
    } else {
    }
    %c0 = arith.constant 0 : index
    %c0_1 = arith.constant 0 : index
    %3 = vector.load %arg10[%c0, %c0_1] : memref<16x32xf32, #tpu.memory_space<vmem>>, vector<16x32xf32>
    %c0_2 = arith.constant 0 : index
    %c0_3 = arith.constant 0 : index
    %4 = vector.load %arg2[%c0_2, %c0_3] : memref<16x8xbf16, #tpu.memory_space<vmem>>, vector<16x8xbf16>
    %c0_4 = arith.constant 0 : index
    %c0_5 = arith.constant 0 : index
    %5 = vector.load %arg3[%c0_4, %c0_5] : memref<8x32xbf16, #tpu.memory_space<vmem>>, vector<8x32xbf16>
    %cst = arith.constant dense<0.000000e+00> : vector<16x32xf32>
    %6 = tpu.matmul %4, %5, %cst {dimension_numbers = #tpu.dot_dimension_numbers<[1], [0], [0], [1], [0, 0, 1, 1], [], []>} : vector<16x8xbf16>, vector<8x32xbf16>, vector<16x32xf32> -> vector<16x32xf32>
    %7 = arith.addf %3, %6 : vector<16x32xf32>
    %c0_6 = arith.constant 0 : index
    %c0_7 = arith.constant 0 : index
    %8 = vector.load %arg10[%c0_6, %c0_7] : memref<16x32xf32, #tpu.memory_space<vmem>>, vector<16x32xf32>
    tpu.vector_store %arg10[%c0_6, %c0_7], %7 {strides = array<i32>} : memref<16x32xf32, #tpu.memory_space<vmem>>, vector<16x32xf32>,
    %c0_i32_8 = arith.constant 0 : i32
    %9 = arith.cmpi eq, %arg1, %c0_i32_8 : i32
    %10 = arith.extui %9 : i1 to i32
    %c0_i32_9 = arith.constant 0 : i32
    %11 = arith.cmpi ne, %10, %c0_i32_9 : i32
    scf.if %11 {
      %c0_10 = arith.constant 0 : index
      %c0_11 = arith.constant 0 : index
      %12 = vector.load %arg10[%c0_10, %c0_11] : memref<16x32xf32, #tpu.memory_space<vmem>>, vector<16x32xf32>
      %c0_12 = arith.constant 0 : index
      %c0_13 = arith.constant 0 : index
      %13 = vector.load %arg4[%c0_12, %c0_13] : memref<1x32xf32, #tpu.memory_space<vmem>>, vector<1x32xf32>
      %14 = vector.broadcast %13 : vector<1x32xf32> to vector<16x32xf32>
      %15 = arith.addf %12, %14 : vector<16x32xf32>
      %c0_14 = arith.constant 0 : index
      %c0_15 = arith.constant 0 : index
      %16 = vector.load %arg5[%c0_14, %c0_15] : memref<16x32xf32, #tpu.memory_space<vmem>>, vector<16x32xf32>
      %17 = arith.addf %15, %16 : vector<16x32xf32>
      %c0_16 = arith.constant 0 : index
      %c0_17 = arith.constant 0 : index
      %18 = vector.load %arg8[%c0_16, %c0_17] : memref<16x32xf32, #tpu.memory_space<vmem>>, vector<16x32xf32>
      tpu.vector_store %arg8[%c0_16, %c0_17], %17 {strides = array<i32>} : memref<16x32xf32, #tpu.memory_space<vmem>>, vector<16x32xf32>,
      %cst_18 = arith.constant dense<0.000000e+00> : vector<16xf32>
      %19 = vector.multi_reduction <add>, %17, %cst_18 [1] : vector<16x32xf32> to vector<16xf32>
      %20 = vector.shape_cast %19 : vector<16xf32> to vector<16x1xf32>
      %cst_19 = arith.constant 3.200000e+01 : f32
      %21 = vector.broadcast %cst_19 : f32 to vector<16x1xf32>
      %22 = arith.divf %20, %21 : vector<16x1xf32>
      %23 = vector.broadcast %22 : vector<16x1xf32> to vector<16x32xf32>
      %24 = arith.subf %17, %23 : vector<16x32xf32>
      %25 = arith.mulf %24, %24 : vector<16x32xf32>
      %cst_20 = arith.constant dense<0.000000e+00> : vector<16xf32>
      %26 = vector.multi_reduction <add>, %25, %cst_20 [1] : vector<16x32xf32> to vector<16xf32>
      %27 = vector.shape_cast %26 : vector<16xf32> to vector<16x1xf32>
      %cst_21 = arith.constant 3.200000e+01 : f32
      %28 = vector.broadcast %cst_21 : f32 to vector<16x1xf32>
      %29 = arith.divf %27, %28 : vector<16x1xf32>
      %cst_22 = arith.constant 9.99999974E-6 : f32
      %30 = vector.broadcast %cst_22 : f32 to vector<16x1xf32>
      %31 = arith.addf %29, %30 : vector<16x1xf32>
      %32 = math.rsqrt %31 : vector<16x1xf32>
      %33 = vector.broadcast %22 : vector<16x1xf32> to vector<16x32xf32>
      %34 = arith.subf %17, %33 : vector<16x32xf32>
      %35 = vector.broadcast %32 : vector<16x1xf32> to vector<16x32xf32>
      %36 = arith.mulf %34, %35 : vector<16x32xf32>
      %c0_23 = arith.constant 0 : index
      %c0_24 = arith.constant 0 : index
      %37 = vector.load %arg6[%c0_23, %c0_24] : memref<1x32xf32, #tpu.memory_space<vmem>>, vector<1x32xf32>
      %38 = vector.broadcast %37 : vector<1x32xf32> to vector<16x32xf32>
      %39 = arith.mulf %36, %38 : vector<16x32xf32>
      %c0_25 = arith.constant 0 : index
      %c0_26 = arith.constant 0 : index
      %40 = vector.load %arg7[%c0_25, %c0_26] : memref<1x32xf32, #tpu.memory_space<vmem>>, vector<1x32xf32>
      %41 = vector.broadcast %40 : vector<1x32xf32> to vector<16x32xf32>
      %42 = arith.addf %39, %41 : vector<16x32xf32>
      %43 = arith.truncf %42 : vector<16x32xf32> to vector<16x32xbf16>
      %c0_27 = arith.constant 0 : index
      %c0_28 = arith.constant 0 : index
      %44 = vector.load %arg9[%c0_27, %c0_28] : memref<16x32xbf16, #tpu.memory_space<vmem>>, vector<16x32xbf16>
      tpu.vector_store %arg9[%c0_27, %c0_28], %43 {strides = array<i32>} : memref<16x32xbf16, #tpu.memory_space<vmem>>, vector<16x32xbf16>,
    } else {
    }
    return
  }
  func.func @transform_0(%arg0: i32, %arg1: i32) -> (i32, i32) {
    %c0_i32 = arith.constant 0 : i32
    return %arg0, %arg1 : i32, i32
  }
  func.func @transform_1(%arg0: i32, %arg1: i32) -> (i32, i32) {
    %c0_i32 = arith.constant 0 : i32
    %c0_i32_0 = arith.constant 0 : i32
    return %arg1, %c0_i32 : i32, i32
  }
  func.func @transform_2(%arg0: i32, %arg1: i32) -> (i32, i32) {
    %c0_i32 = arith.constant 0 : i32
    %c0_i32_0 = arith.constant 0 : i32
    %c0_i32_1 = arith.constant 0 : i32
    return %c0_i32, %c0_i32_0 : i32, i32
  }
  func.func @transform_3(%arg0: i32, %arg1: i32) -> (i32, i32) {
    %c0_i32 = arith.constant 0 : i32
    %c0_i32_0 = arith.constant 0 : i32
    return %arg0, %c0_i32 : i32, i32
  }
  func.func @transform_4(%arg0: i32, %arg1: i32) -> (i32, i32) {
    %c0_i32 = arith.constant 0 : i32
    %c0_i32_0 = arith.constant 0 : i32
    %c0_i32_1 = arith.constant 0 : i32
    return %c0_i32, %c0_i32_0 : i32, i32
  }
  func.func @transform_5(%arg0: i32, %arg1: i32) -> (i32, i32) {
    %c0_i32 = arith.constant 0 : i32
    %c0_i32_0 = arith.constant 0 : i32
    %c0_i32_1 = arith.constant 0 : i32
    return %c0_i32, %c0_i32_0 : i32, i32
  }
  func.func @transform_6(%arg0: i32, %arg1: i32) -> (i32, i32) {
    %c0_i32 = arith.constant 0 : i32
    %c0_i32_0 = arith.constant 0 : i32
    return %arg0, %c0_i32 : i32, i32
  }
  func.func @transform_7(%arg0: i32, %arg1: i32) -> (i32, i32) {
    %c0_i32 = arith.constant 0 : i32
    %c0_i32_0 = arith.constant 0 : i32
    return %arg0, %c0_i32 : i32, i32
  }
}

module attributes {stable_mosaic.version = 11 : i64} {
  func.func @_matmul_kernel(%arg0: i32, %arg1: i32, %arg2: i32, %arg3: memref<16x32xbf16, #tpu.memory_space<vmem>>, %arg4: memref<32x96xbf16, #tpu.memory_space<vmem>>, %arg5: memref<1x96xf32, #tpu.memory_space<vmem>>, %arg6: memref<16x96xbf16, #tpu.memory_space<vmem>>, %arg7: memref<16x96xf32, #tpu.memory_space<vmem>>) attributes {dimension_semantics = [#tpu.dimension_semantics<parallel>, #tpu.dimension_semantics<parallel>, #tpu.dimension_semantics<arbitrary>], iteration_bounds = array<i64: 1, 1, 1>, scalar_prefetch = 0 : i64, scratch_operands = 1 : i64, tpu.core_type = #tpu.core_type<tc>, window_params = [{transform_indices = @transform_0, window_bounds = array<i64: 16, 32>}, {transform_indices = @transform_1, window_bounds = array<i64: 32, 96>}, {transform_indices = @transform_2, window_bounds = array<i64: 1, 96>}, {transform_indices = @transform_3, window_bounds = array<i64: 16, 96>}]} {
    %c0_i32 = arith.constant 0 : i32
    %0 = arith.cmpi eq, %arg2, %c0_i32 : i32
    %1 = arith.extui %0 : i1 to i32
    %c0_i32_0 = arith.constant 0 : i32
    %2 = arith.cmpi ne, %1, %c0_i32_0 : i32
    scf.if %2 {
      %cst_10 = arith.constant 0.000000e+00 : f32
      %12 = vector.broadcast %cst_10 : f32 to vector<16x96xf32>
      %c0_11 = arith.constant 0 : index
      %c0_12 = arith.constant 0 : index
      %13 = vector.load %arg7[%c0_11, %c0_12] : memref<16x96xf32, #tpu.memory_space<vmem>>, vector<16x96xf32>
      tpu.vector_store %arg7[%c0_11, %c0_12], %12 {strides = array<i32>} : memref<16x96xf32, #tpu.memory_space<vmem>>, vector<16x96xf32>,
    } else {
    }
    %c0 = arith.constant 0 : index
    %c0_1 = arith.constant 0 : index
    %3 = vector.load %arg7[%c0, %c0_1] : memref<16x96xf32, #tpu.memory_space<vmem>>, vector<16x96xf32>
    %c0_2 = arith.constant 0 : index
    %c0_3 = arith.constant 0 : index
    %4 = vector.load %arg3[%c0_2, %c0_3] : memref<16x32xbf16, #tpu.memory_space<vmem>>, vector<16x32xbf16>
    %c0_4 = arith.constant 0 : index
    %c0_5 = arith.constant 0 : index
    %5 = vector.load %arg4[%c0_4, %c0_5] : memref<32x96xbf16, #tpu.memory_space<vmem>>, vector<32x96xbf16>
    %cst = arith.constant dense<0.000000e+00> : vector<16x96xf32>
    %6 = tpu.matmul %4, %5, %cst {dimension_numbers = #tpu.dot_dimension_numbers<[1], [0], [0], [1], [0, 0, 1, 1], [], []>} : vector<16x32xbf16>, vector<32x96xbf16>, vector<16x96xf32> -> vector<16x96xf32>
    %7 = arith.addf %3, %6 : vector<16x96xf32>
    %c0_6 = arith.constant 0 : index
    %c0_7 = arith.constant 0 : index
    %8 = vector.load %arg7[%c0_6, %c0_7] : memref<16x96xf32, #tpu.memory_space<vmem>>, vector<16x96xf32>
    tpu.vector_store %arg7[%c0_6, %c0_7], %7 {strides = array<i32>} : memref<16x96xf32, #tpu.memory_space<vmem>>, vector<16x96xf32>,
    %c0_i32_8 = arith.constant 0 : i32
    %9 = arith.cmpi eq, %arg2, %c0_i32_8 : i32
    %10 = arith.extui %9 : i1 to i32
    %c0_i32_9 = arith.constant 0 : i32
    %11 = arith.cmpi ne, %10, %c0_i32_9 : i32
    scf.if %11 {
      %c0_10 = arith.constant 0 : index
      %c0_11 = arith.constant 0 : index
      %12 = vector.load %arg7[%c0_10, %c0_11] : memref<16x96xf32, #tpu.memory_space<vmem>>, vector<16x96xf32>
      %c0_12 = arith.constant 0 : index
      %c0_13 = arith.constant 0 : index
      %13 = vector.load %arg5[%c0_12, %c0_13] : memref<1x96xf32, #tpu.memory_space<vmem>>, vector<1x96xf32>
      %14 = vector.broadcast %13 : vector<1x96xf32> to vector<16x96xf32>
      %15 = arith.addf %12, %14 : vector<16x96xf32>
      %16 = arith.truncf %15 : vector<16x96xf32> to vector<16x96xbf16>
      %c0_14 = arith.constant 0 : index
      %c0_15 = arith.constant 0 : index
      %17 = vector.load %arg6[%c0_14, %c0_15] : memref<16x96xbf16, #tpu.memory_space<vmem>>, vector<16x96xbf16>
      tpu.vector_store %arg6[%c0_14, %c0_15], %16 {strides = array<i32>} : memref<16x96xbf16, #tpu.memory_space<vmem>>, vector<16x96xbf16>,
    } else {
    }
    return
  }
  func.func @transform_0(%arg0: i32, %arg1: i32, %arg2: i32) -> (i32, i32) {
    %c0_i32 = arith.constant 0 : i32
    return %arg0, %arg2 : i32, i32
  }
  func.func @transform_1(%arg0: i32, %arg1: i32, %arg2: i32) -> (i32, i32) {
    %c0_i32 = arith.constant 0 : i32
    return %arg2, %arg1 : i32, i32
  }
  func.func @transform_2(%arg0: i32, %arg1: i32, %arg2: i32) -> (i32, i32) {
    %c0_i32 = arith.constant 0 : i32
    %c0_i32_0 = arith.constant 0 : i32
    return %c0_i32, %arg1 : i32, i32
  }
  func.func @transform_3(%arg0: i32, %arg1: i32, %arg2: i32) -> (i32, i32) {
    %c0_i32 = arith.constant 0 : i32
    return %arg0, %arg1 : i32, i32
  }
}

module attributes {stable_mosaic.version = 11 : i64} {
  func.func @_attn_kernel(%arg0: i32, %arg1: memref<1x8x96xbf16, #tpu.memory_space<vmem>>, %arg2: memref<1x8x32xbf16, #tpu.memory_space<vmem>>) attributes {dimension_semantics = [#tpu.dimension_semantics<parallel>], iteration_bounds = array<i64: 2>, scalar_prefetch = 0 : i64, scratch_operands = 0 : i64, tpu.core_type = #tpu.core_type<tc>, window_params = [{transform_indices = @transform_0, window_bounds = array<i64: 1, 8, 96>}, {transform_indices = @transform_1, window_bounds = array<i64: 1, 8, 32>}]} {
    %0 = tpu.iota {dimensions = array<i32: 0>} : vector<8x8xi32>
    %1 = tpu.iota {dimensions = array<i32: 1>} : vector<8x8xi32>
    %2 = arith.cmpi sle, %1, %0 : vector<8x8xi32>
    %cst = arith.constant 0.000000e+00 : f32
    %cst_0 = arith.constant -1.000000e+30 : f32
    %3 = vector.broadcast %cst : f32 to vector<8x8xf32>
    %4 = vector.broadcast %cst_0 : f32 to vector<8x8xf32>
    %5 = arith.select %2, %3, %4 : vector<8x8xi1>, vector<8x8xf32>
    %c0 = arith.constant 0 : index
    %c0_1 = arith.constant 0 : index
    %c0_2 = arith.constant 0 : index
    %6 = vector.load %arg1[%c0, %c0_1, %c0_2] : memref<1x8x96xbf16, #tpu.memory_space<vmem>>, vector<1x8x8xbf16>
    %7 = vector.shape_cast %6 : vector<1x8x8xbf16> to vector<8x8xbf16>
    %cst_3 = arith.constant 3.535160e-01 : bf16
    %8 = vector.broadcast %cst_3 : bf16 to vector<8x8xbf16>
    %9 = arith.mulf %7, %8 : vector<8x8xbf16>
    %c0_4 = arith.constant 0 : index
    %c0_5 = arith.constant 0 : index
    %c32 = arith.constant 32 : index
    %10 = vector.load %arg1[%c0_4, %c0_5, %c32] : memref<1x8x96xbf16, #tpu.memory_space<vmem>>, vector<1x8x8xbf16>
    %11 = vector.shape_cast %10 : vector<1x8x8xbf16> to vector<8x8xbf16>
    %c0_6 = arith.constant 0 : index
    %c0_7 = arith.constant 0 : index
    %c64 = arith.constant 64 : index
    %12 = vector.load %arg1[%c0_6, %c0_7, %c64] : memref<1x8x96xbf16, #tpu.memory_space<vmem>>, vector<1x8x8xbf16>
    %13 = vector.shape_cast %12 : vector<1x8x8xbf16> to vector<8x8xbf16>
    %cst_8 = arith.constant dense<0.000000e+00> : vector<8x8xf32>
    %14 = tpu.matmul %9, %11, %cst_8 {dimension_numbers = #tpu.dot_dimension_numbers<[1], [1], [0], [0], [0, 0, 1, 0], [], []>} : vector<8x8xbf16>, vector<8x8xbf16>, vector<8x8xf32> -> vector<8x8xf32>
    %15 = arith.addf %14, %5 : vector<8x8xf32>
    %cst_9 = arith.constant dense<0xFF800000> : vector<8xf32>
    %16 = vector.multi_reduction <maximumf>, %15, %cst_9 [1] : vector<8x8xf32> to vector<8xf32>
    %17 = vector.shape_cast %16 : vector<8xf32> to vector<8x1xf32>
    %18 = vector.broadcast %17 : vector<8x1xf32> to vector<8x8xf32>
    %19 = arith.subf %15, %18 : vector<8x8xf32>
    %20 = math.exp %19 : vector<8x8xf32>
    %cst_10 = arith.constant dense<0.000000e+00> : vector<8xf32>
    %21 = vector.multi_reduction <add>, %20, %cst_10 [1] : vector<8x8xf32> to vector<8xf32>
    %22 = vector.shape_cast %21 : vector<8xf32> to vector<8x1xf32>
    %23 = tpu.reciprocal %22 {approx = true} : vector<8x1xf32> -> vector<8x1xf32>
    %24 = vector.broadcast %23 : vector<8x1xf32> to vector<8x8xf32>
    %25 = arith.mulf %20, %24 : vector<8x8xf32>
    %26 = arith.truncf %25 : vector<8x8xf32> to vector<8x8xbf16>
    %cst_11 = arith.constant dense<0.000000e+00> : vector<8x8xf32>
    %27 = tpu.matmul %26, %13, %cst_11 {dimension_numbers = #tpu.dot_dimension_numbers<[1], [0], [0], [1], [0, 0, 1, 1], [], []>} : vector<8x8xbf16>, vector<8x8xbf16>, vector<8x8xf32> -> vector<8x8xf32>
    %c0_12 = arith.constant 0 : index
    %c0_13 = arith.constant 0 : index
    %c8 = arith.constant 8 : index
    %28 = vector.load %arg1[%c0_12, %c0_13, %c8] : memref<1x8x96xbf16, #tpu.memory_space<vmem>>, vector<1x8x8xbf16>
    %29 = vector.shape_cast %28 : vector<1x8x8xbf16> to vector<8x8xbf16>
    %cst_14 = arith.constant 3.535160e-01 : bf16
    %30 = vector.broadcast %cst_14 : bf16 to vector<8x8xbf16>
    %31 = arith.mulf %29, %30 : vector<8x8xbf16>
    %c0_15 = arith.constant 0 : index
    %c0_16 = arith.constant 0 : index
    %c40 = arith.constant 40 : index
    %32 = vector.load %arg1[%c0_15, %c0_16, %c40] : memref<1x8x96xbf16, #tpu.memory_space<vmem>>, vector<1x8x8xbf16>
    %33 = vector.shape_cast %32 : vector<1x8x8xbf16> to vector<8x8xbf16>
    %c0_17 = arith.constant 0 : index
    %c0_18 = arith.constant 0 : index
    %c72 = arith.constant 72 : index
    %34 = vector.load %arg1[%c0_17, %c0_18, %c72] : memref<1x8x96xbf16, #tpu.memory_space<vmem>>, vector<1x8x8xbf16>
    %35 = vector.shape_cast %34 : vector<1x8x8xbf16> to vector<8x8xbf16>
    %cst_19 = arith.constant dense<0.000000e+00> : vector<8x8xf32>
    %36 = tpu.matmul %31, %33, %cst_19 {dimension_numbers = #tpu.dot_dimension_numbers<[1], [1], [0], [0], [0, 0, 1, 0], [], []>} : vector<8x8xbf16>, vector<8x8xbf16>, vector<8x8xf32> -> vector<8x8xf32>
    %37 = arith.addf %36, %5 : vector<8x8xf32>
    %cst_20 = arith.constant dense<0xFF800000> : vector<8xf32>
    %38 = vector.multi_reduction <maximumf>, %37, %cst_20 [1] : vector<8x8xf32> to vector<8xf32>
    %39 = vector.shape_cast %38 : vector<8xf32> to vector<8x1xf32>
    %40 = vector.broadcast %39 : vector<8x1xf32> to vector<8x8xf32>
    %41 = arith.subf %37, %40 : vector<8x8xf32>
    %42 = math.exp %41 : vector<8x8xf32>
    %cst_21 = arith.constant dense<0.000000e+00> : vector<8xf32>
    %43 = vector.multi_reduction <add>, %42, %cst_21 [1] : vector<8x8xf32> to vector<8xf32>
    %44 = vector.shape_cast %43 : vector<8xf32> to vector<8x1xf32>
    %45 = tpu.reciprocal %44 {approx = true} : vector<8x1xf32> -> vector<8x1xf32>
    %46 = vector.broadcast %45 : vector<8x1xf32> to vector<8x8xf32>
    %47 = arith.mulf %42, %46 : vector<8x8xf32>
    %48 = arith.truncf %47 : vector<8x8xf32> to vector<8x8xbf16>
    %cst_22 = arith.constant dense<0.000000e+00> : vector<8x8xf32>
    %49 = tpu.matmul %48, %35, %cst_22 {dimension_numbers = #tpu.dot_dimension_numbers<[1], [0], [0], [1], [0, 0, 1, 1], [], []>} : vector<8x8xbf16>, vector<8x8xbf16>, vector<8x8xf32> -> vector<8x8xf32>
    %c0_23 = arith.constant 0 : index
    %c0_24 = arith.constant 0 : index
    %c16 = arith.constant 16 : index
    %50 = vector.load %arg1[%c0_23, %c0_24, %c16] : memref<1x8x96xbf16, #tpu.memory_space<vmem>>, vector<1x8x8xbf16>
    %51 = vector.shape_cast %50 : vector<1x8x8xbf16> to vector<8x8xbf16>
    %cst_25 = arith.constant 3.535160e-01 : bf16
    %52 = vector.broadcast %cst_25 : bf16 to vector<8x8xbf16>
    %53 = arith.mulf %51, %52 : vector<8x8xbf16>
    %c0_26 = arith.constant 0 : index
    %c0_27 = arith.constant 0 : index
    %c48 = arith.constant 48 : index
    %54 = vector.load %arg1[%c0_26, %c0_27, %c48] : memref<1x8x96xbf16, #tpu.memory_space<vmem>>, vector<1x8x8xbf16>
    %55 = vector.shape_cast %54 : vector<1x8x8xbf16> to vector<8x8xbf16>
    %c0_28 = arith.constant 0 : index
    %c0_29 = arith.constant 0 : index
    %c80 = arith.constant 80 : index
    %56 = vector.load %arg1[%c0_28, %c0_29, %c80] : memref<1x8x96xbf16, #tpu.memory_space<vmem>>, vector<1x8x8xbf16>
    %57 = vector.shape_cast %56 : vector<1x8x8xbf16> to vector<8x8xbf16>
    %cst_30 = arith.constant dense<0.000000e+00> : vector<8x8xf32>
    %58 = tpu.matmul %53, %55, %cst_30 {dimension_numbers = #tpu.dot_dimension_numbers<[1], [1], [0], [0], [0, 0, 1, 0], [], []>} : vector<8x8xbf16>, vector<8x8xbf16>, vector<8x8xf32> -> vector<8x8xf32>
    %59 = arith.addf %58, %5 : vector<8x8xf32>
    %cst_31 = arith.constant dense<0xFF800000> : vector<8xf32>
    %60 = vector.multi_reduction <maximumf>, %59, %cst_31 [1] : vector<8x8xf32> to vector<8xf32>
    %61 = vector.shape_cast %60 : vector<8xf32> to vector<8x1xf32>
    %62 = vector.broadcast %61 : vector<8x1xf32> to vector<8x8xf32>
    %63 = arith.subf %59, %62 : vector<8x8xf32>
    %64 = math.exp %63 : vector<8x8xf32>
    %cst_32 = arith.constant dense<0.000000e+00> : vector<8xf32>
    %65 = vector.multi_reduction <add>, %64, %cst_32 [1] : vector<8x8xf32> to vector<8xf32>
    %66 = vector.shape_cast %65 : vector<8xf32> to vector<8x1xf32>
    %67 = tpu.reciprocal %66 {approx = true} : vector<8x1xf32> -> vector<8x1xf32>
    %68 = vector.broadcast %67 : vector<8x1xf32> to vector<8x8xf32>
    %69 = arith.mulf %64, %68 : vector<8x8xf32>
    %70 = arith.truncf %69 : vector<8x8xf32> to vector<8x8xbf16>
    %cst_33 = arith.constant dense<0.000000e+00> : vector<8x8xf32>
    %71 = tpu.matmul %70, %57, %cst_33 {dimension_numbers = #tpu.dot_dimension_numbers<[1], [0], [0], [1], [0, 0, 1, 1], [], []>} : vector<8x8xbf16>, vector<8x8xbf16>, vector<8x8xf32> -> vector<8x8xf32>
    %c0_34 = arith.constant 0 : index
    %c0_35 = arith.constant 0 : index
    %c24 = arith.constant 24 : index
    %72 = vector.load %arg1[%c0_34, %c0_35, %c24] : memref<1x8x96xbf16, #tpu.memory_space<vmem>>, vector<1x8x8xbf16>
    %73 = vector.shape_cast %72 : vector<1x8x8xbf16> to vector<8x8xbf16>
    %cst_36 = arith.constant 3.535160e-01 : bf16
    %74 = vector.broadcast %cst_36 : bf16 to vector<8x8xbf16>
    %75 = arith.mulf %73, %74 : vector<8x8xbf16>
    %c0_37 = arith.constant 0 : index
    %c0_38 = arith.constant 0 : index
    %c56 = arith.constant 56 : index
    %76 = vector.load %arg1[%c0_37, %c0_38, %c56] : memref<1x8x96xbf16, #tpu.memory_space<vmem>>, vector<1x8x8xbf16>
    %77 = vector.shape_cast %76 : vector<1x8x8xbf16> to vector<8x8xbf16>
    %c0_39 = arith.constant 0 : index
    %c0_40 = arith.constant 0 : index
    %c88 = arith.constant 88 : index
    %78 = vector.load %arg1[%c0_39, %c0_40, %c88] : memref<1x8x96xbf16, #tpu.memory_space<vmem>>, vector<1x8x8xbf16>
    %79 = vector.shape_cast %78 : vector<1x8x8xbf16> to vector<8x8xbf16>
    %cst_41 = arith.constant dense<0.000000e+00> : vector<8x8xf32>
    %80 = tpu.matmul %75, %77, %cst_41 {dimension_numbers = #tpu.dot_dimension_numbers<[1], [1], [0], [0], [0, 0, 1, 0], [], []>} : vector<8x8xbf16>, vector<8x8xbf16>, vector<8x8xf32> -> vector<8x8xf32>
    %81 = arith.addf %80, %5 : vector<8x8xf32>
    %cst_42 = arith.constant dense<0xFF800000> : vector<8xf32>
    %82 = vector.multi_reduction <maximumf>, %81, %cst_42 [1] : vector<8x8xf32> to vector<8xf32>
    %83 = vector.shape_cast %82 : vector<8xf32> to vector<8x1xf32>
    %84 = vector.broadcast %83 : vector<8x1xf32> to vector<8x8xf32>
    %85 = arith.subf %81, %84 : vector<8x8xf32>
    %86 = math.exp %85 : vector<8x8xf32>
    %cst_43 = arith.constant dense<0.000000e+00> : vector<8xf32>
    %87 = vector.multi_reduction <add>, %86, %cst_43 [1] : vector<8x8xf32> to vector<8xf32>
    %88 = vector.shape_cast %87 : vector<8xf32> to vector<8x1xf32>
    %89 = tpu.reciprocal %88 {approx = true} : vector<8x1xf32> -> vector<8x1xf32>
    %90 = vector.broadcast %89 : vector<8x1xf32> to vector<8x8xf32>
    %91 = arith.mulf %86, %90 : vector<8x8xf32>
    %92 = arith.truncf %91 : vector<8x8xf32> to vector<8x8xbf16>
    %cst_44 = arith.constant dense<0.000000e+00> : vector<8x8xf32>
    %93 = tpu.matmul %92, %79, %cst_44 {dimension_numbers = #tpu.dot_dimension_numbers<[1], [0], [0], [1], [0, 0, 1, 1], [], []>} : vector<8x8xbf16>, vector<8x8xbf16>, vector<8x8xf32> -> vector<8x8xf32>
    %94 = tpu.concatenate %27, %49, %71, %93 in 1 : vector<8x8xf32>, vector<8x8xf32>, vector<8x8xf32>, vector<8x8xf32> -> vector<8x32xf32>
    %95 = arith.truncf %94 : vector<8x32xf32> to vector<8x32xbf16>
    %c0_45 = arith.constant 0 : index
    %c0_46 = arith.constant 0 : index
    %c0_47 = arith.constant 0 : index
    %96 = vector.load %arg2[%c0_45, %c0_46, %c0_47] : memref<1x8x32xbf16, #tpu.memory_space<vmem>>, vector<1x8x32xbf16>
    %97 = vector.shape_cast %96 : vector<1x8x32xbf16> to vector<8x32xbf16>
    %98 = vector.shape_cast %95 : vector<8x32xbf16> to vector<1x8x32xbf16>
    tpu.vector_store %arg2[%c0_45, %c0_46, %c0_47], %98 {strides = array<i32>} : memref<1x8x32xbf16, #tpu.memory_space<vmem>>, vector<1x8x32xbf16>,
    return
  }
  func.func @transform_0(%arg0: i32) -> (i32, i32, i32) {
    %c0_i32 = arith.constant 0 : i32
    %c0_i32_0 = arith.constant 0 : i32
    %c0_i32_1 = arith.constant 0 : i32
    return %arg0, %c0_i32, %c0_i32_0 : i32, i32, i32
  }
  func.func @transform_1(%arg0: i32) -> (i32, i32, i32) {
    %c0_i32 = arith.constant 0 : i32
    %c0_i32_0 = arith.constant 0 : i32
    %c0_i32_1 = arith.constant 0 : i32
    return %arg0, %c0_i32, %c0_i32_0 : i32, i32, i32
  }
}

module attributes {stable_mosaic.version = 11 : i64} {
  func.func @_matmul_res_ln_kernel(%arg0: i32, %arg1: i32, %arg2: memref<16x32xbf16, #tpu.memory_space<vmem>>, %arg3: memref<32x32xbf16, #tpu.memory_space<vmem>>, %arg4: memref<1x32xf32, #tpu.memory_space<vmem>>, %arg5: memref<16x32xf32, #tpu.memory_space<vmem>>, %arg6: memref<1x32xf32, #tpu.memory_space<vmem>>, %arg7: memref<1x32xf32, #tpu.memory_space<vmem>>, %arg8: memref<16x32xf32, #tpu.memory_space<vmem>>, %arg9: memref<16x32xbf16, #tpu.memory_space<vmem>>, %arg10: memref<16x32xf32, #tpu.memory_space<vmem>>) attributes {dimension_semantics = [#tpu.dimension_semantics<parallel>, #tpu.dimension_semantics<arbitrary>], iteration_bounds = array<i64: 1, 1>, scalar_prefetch = 0 : i64, scratch_operands = 1 : i64, tpu.core_type = #tpu.core_type<tc>, window_params = [{transform_indices = @transform_0, window_bounds = array<i64: 16, 32>}, {transform_indices = @transform_1, window_bounds = array<i64: 32, 32>}, {pipeline_mode = #tpu.pipeline_mode<synchronous>, transform_indices = @transform_2, window_bounds = array<i64: 1, 32>}, {transform_indices = @transform_3, window_bounds = array<i64: 16, 32>}, {pipeline_mode = #tpu.pipeline_mode<synchronous>, transform_indices = @transform_4, window_bounds = array<i64: 1, 32>}, {pipeline_mode = #tpu.pipeline_mode<synchronous>, transform_indices = @transform_5, window_bounds = array<i64: 1, 32>}, {transform_indices = @transform_6, window_bounds = array<i64: 16, 32>}, {transform_indices = @transform_7, window_bounds = array<i64: 16, 32>}]} {
    %c0_i32 = arith.constant 0 : i32
    %0 = arith.cmpi eq, %arg1, %c0_i32 : i32
    %1 = arith.extui %0 : i1 to i32
    %c0_i32_0 = arith.constant 0 : i32
    %2 = arith.cmpi ne, %1, %c0_i32_0 : i32
    scf.if %2 {
      %cst_10 = arith.constant 0.000000e+00 : f32
      %12 = vector.broadcast %cst_10 : f32 to vector<16x32xf32>
      %c0_11 = arith.constant 0 : index
      %c0_12 = arith.constant 0 : index
      %13 = vector.load %arg10[%c0_11, %c0_12] : memref<16x32xf32, #tpu.memory_space<vmem>>, vector<16x32xf32>
      tpu.vector_store %arg10[%c0_11, %c0_12], %12 {strides = array<i32>} : memref<16x32xf32, #tpu.memory_space<vmem>>, vector<16x32xf32>,
    } else {
    }
    %c0 = arith.constant 0 : index
    %c0_1 = arith.constant 0 : index
    %3 = vector.load %arg10[%c0, %c0_1] : memref<16x32xf32, #tpu.memory_space<vmem>>, vector<16x32xf32>
    %c0_2 = arith.constant 0 : index
    %c0_3 = arith.constant 0 : index
    %4 = vector.load %arg2[%c0_2, %c0_3] : memref<16x32xbf16, #tpu.memory_space<vmem>>, vector<16x32xbf16>
    %c0_4 = arith.constant 0 : index
    %c0_5 = arith.constant 0 : index
    %5 = vector.load %arg3[%c0_4, %c0_5] : memref<32x32xbf16, #tpu.memory_space<vmem>>, vector<32x32xbf16>
    %cst = arith.constant dense<0.000000e+00> : vector<16x32xf32>
    %6 = tpu.matmul %4, %5, %cst {dimension_numbers = #tpu.dot_dimension_numbers<[1], [0], [0], [1], [0, 0, 1, 1], [], []>} : vector<16x32xbf16>, vector<32x32xbf16>, vector<16x32xf32> -> vector<16x32xf32>
    %7 = arith.addf %3, %6 : vector<16x32xf32>
    %c0_6 = arith.constant 0 : index
    %c0_7 = arith.constant 0 : index
    %8 = vector.load %arg10[%c0_6, %c0_7] : memref<16x32xf32, #tpu.memory_space<vmem>>, vector<16x32xf32>
    tpu.vector_store %arg10[%c0_6, %c0_7], %7 {strides = array<i32>} : memref<16x32xf32, #tpu.memory_space<vmem>>, vector<16x32xf32>,
    %c0_i32_8 = arith.constant 0 : i32
    %9 = arith.cmpi eq, %arg1, %c0_i32_8 : i32
    %10 = arith.extui %9 : i1 to i32
    %c0_i32_9 = arith.constant 0 : i32
    %11 = arith.cmpi ne, %10, %c0_i32_9 : i32
    scf.if %11 {
      %c0_10 = arith.constant 0 : index
      %c0_11 = arith.constant 0 : index
      %12 = vector.load %arg10[%c0_10, %c0_11] : memref<16x32xf32, #tpu.memory_space<vmem>>, vector<16x32xf32>
      %c0_12 = arith.constant 0 : index
      %c0_13 = arith.constant 0 : index
      %13 = vector.load %arg4[%c0_12, %c0_13] : memref<1x32xf32, #tpu.memory_space<vmem>>, vector<1x32xf32>
      %14 = vector.broadcast %13 : vector<1x32xf32> to vector<16x32xf32>
      %15 = arith.addf %12, %14 : vector<16x32xf32>
      %c0_14 = arith.constant 0 : index
      %c0_15 = arith.constant 0 : index
      %16 = vector.load %arg5[%c0_14, %c0_15] : memref<16x32xf32, #tpu.memory_space<vmem>>, vector<16x32xf32>
      %17 = arith.addf %15, %16 : vector<16x32xf32>
      %c0_16 = arith.constant 0 : index
      %c0_17 = arith.constant 0 : index
      %18 = vector.load %arg8[%c0_16, %c0_17] : memref<16x32xf32, #tpu.memory_space<vmem>>, vector<16x32xf32>
      tpu.vector_store %arg8[%c0_16, %c0_17], %17 {strides = array<i32>} : memref<16x32xf32, #tpu.memory_space<vmem>>, vector<16x32xf32>,
      %cst_18 = arith.constant dense<0.000000e+00> : vector<16xf32>
      %19 = vector.multi_reduction <add>, %17, %cst_18 [1] : vector<16x32xf32> to vector<16xf32>
      %20 = vector.shape_cast %19 : vector<16xf32> to vector<16x1xf32>
      %cst_19 = arith.constant 3.200000e+01 : f32
      %21 = vector.broadcast %cst_19 : f32 to vector<16x1xf32>
      %22 = arith.divf %20, %21 : vector<16x1xf32>
      %23 = vector.broadcast %22 : vector<16x1xf32> to vector<16x32xf32>
      %24 = arith.subf %17, %23 : vector<16x32xf32>
      %25 = arith.mulf %24, %24 : vector<16x32xf32>
      %cst_20 = arith.constant dense<0.000000e+00> : vector<16xf32>
      %26 = vector.multi_reduction <add>, %25, %cst_20 [1] : vector<16x32xf32> to vector<16xf32>
      %27 = vector.shape_cast %26 : vector<16xf32> to vector<16x1xf32>
      %cst_21 = arith.constant 3.200000e+01 : f32
      %28 = vector.broadcast %cst_21 : f32 to vector<16x1xf32>
      %29 = arith.divf %27, %28 : vector<16x1xf32>
      %cst_22 = arith.constant 9.99999974E-6 : f32
      %30 = vector.broadcast %cst_22 : f32 to vector<16x1xf32>
      %31 = arith.addf %29, %30 : vector<16x1xf32>
      %32 = math.rsqrt %31 : vector<16x1xf32>
      %33 = vector.broadcast %22 : vector<16x1xf32> to vector<16x32xf32>
      %34 = arith.subf %17, %33 : vector<16x32xf32>
      %35 = vector.broadcast %32 : vector<16x1xf32> to vector<16x32xf32>
      %36 = arith.mulf %34, %35 : vector<16x32xf32>
      %c0_23 = arith.constant 0 : index
      %c0_24 = arith.constant 0 : index
      %37 = vector.load %arg6[%c0_23, %c0_24] : memref<1x32xf32, #tpu.memory_space<vmem>>, vector<1x32xf32>
      %38 = vector.broadcast %37 : vector<1x32xf32> to vector<16x32xf32>
      %39 = arith.mulf %36, %38 : vector<16x32xf32>
      %c0_25 = arith.constant 0 : index
      %c0_26 = arith.constant 0 : index
      %40 = vector.load %arg7[%c0_25, %c0_26] : memref<1x32xf32, #tpu.memory_space<vmem>>, vector<1x32xf32>
      %41 = vector.broadcast %40 : vector<1x32xf32> to vector<16x32xf32>
      %42 = arith.addf %39, %41 : vector<16x32xf32>
      %43 = arith.truncf %42 : vector<16x32xf32> to vector<16x32xbf16>
      %c0_27 = arith.constant 0 : index
      %c0_28 = arith.constant 0 : index
      %44 = vector.load %arg9[%c0_27, %c0_28] : memref<16x32xbf16, #tpu.memory_space<vmem>>, vector<16x32xbf16>
      tpu.vector_store %arg9[%c0_27, %c0_28], %43 {strides = array<i32>} : memref<16x32xbf16, #tpu.memory_space<vmem>>, vector<16x32xbf16>,
    } else {
    }
    return
  }
  func.func @transform_0(%arg0: i32, %arg1: i32) -> (i32, i32) {
    %c0_i32 = arith.constant 0 : i32
    return %arg0, %arg1 : i32, i32
  }
  func.func @transform_1(%arg0: i32, %arg1: i32) -> (i32, i32) {
    %c0_i32 = arith.constant 0 : i32
    %c0_i32_0 = arith.constant 0 : i32
    return %arg1, %c0_i32 : i32, i32
  }
  func.func @transform_2(%arg0: i32, %arg1: i32) -> (i32, i32) {
    %c0_i32 = arith.constant 0 : i32
    %c0_i32_0 = arith.constant 0 : i32
    %c0_i32_1 = arith.constant 0 : i32
    return %c0_i32, %c0_i32_0 : i32, i32
  }
  func.func @transform_3(%arg0: i32, %arg1: i32) -> (i32, i32) {
    %c0_i32 = arith.constant 0 : i32
    %c0_i32_0 = arith.constant 0 : i32
    return %arg0, %c0_i32 : i32, i32
  }
  func.func @transform_4(%arg0: i32, %arg1: i32) -> (i32, i32) {
    %c0_i32 = arith.constant 0 : i32
    %c0_i32_0 = arith.constant 0 : i32
    %c0_i32_1 = arith.constant 0 : i32
    return %c0_i32, %c0_i32_0 : i32, i32
  }
  func.func @transform_5(%arg0: i32, %arg1: i32) -> (i32, i32) {
    %c0_i32 = arith.constant 0 : i32
    %c0_i32_0 = arith.constant 0 : i32
    %c0_i32_1 = arith.constant 0 : i32
    return %c0_i32, %c0_i32_0 : i32, i32
  }
  func.func @transform_6(%arg0: i32, %arg1: i32) -> (i32, i32) {
    %c0_i32 = arith.constant 0 : i32
    %c0_i32_0 = arith.constant 0 : i32
    return %arg0, %c0_i32 : i32, i32
  }
  func.func @transform_7(%arg0: i32, %arg1: i32) -> (i32, i32) {
    %c0_i32 = arith.constant 0 : i32
    %c0_i32_0 = arith.constant 0 : i32
    return %arg0, %c0_i32 : i32, i32
  }
}

module attributes {stable_mosaic.version = 11 : i64} {
  func.func @_matmul_kernel(%arg0: i32, %arg1: i32, %arg2: i32, %arg3: memref<16x32xbf16, #tpu.memory_space<vmem>>, %arg4: memref<32x128xbf16, #tpu.memory_space<vmem>>, %arg5: memref<1x128xf32, #tpu.memory_space<vmem>>, %arg6: memref<16x128xbf16, #tpu.memory_space<vmem>>, %arg7: memref<16x128xf32, #tpu.memory_space<vmem>>) attributes {dimension_semantics = [#tpu.dimension_semantics<parallel>, #tpu.dimension_semantics<parallel>, #tpu.dimension_semantics<arbitrary>], iteration_bounds = array<i64: 1, 1, 1>, scalar_prefetch = 0 : i64, scratch_operands = 1 : i64, tpu.core_type = #tpu.core_type<tc>, window_params = [{transform_indices = @transform_0, window_bounds = array<i64: 16, 32>}, {transform_indices = @transform_1, window_bounds = array<i64: 32, 128>}, {transform_indices = @transform_2, window_bounds = array<i64: 1, 128>}, {transform_indices = @transform_3, window_bounds = array<i64: 16, 128>}]} {
    %c0_i32 = arith.constant 0 : i32
    %0 = arith.cmpi eq, %arg2, %c0_i32 : i32
    %1 = arith.extui %0 : i1 to i32
    %c0_i32_0 = arith.constant 0 : i32
    %2 = arith.cmpi ne, %1, %c0_i32_0 : i32
    scf.if %2 {
      %cst_10 = arith.constant 0.000000e+00 : f32
      %12 = vector.broadcast %cst_10 : f32 to vector<16x128xf32>
      %c0_11 = arith.constant 0 : index
      %c0_12 = arith.constant 0 : index
      %13 = vector.load %arg7[%c0_11, %c0_12] : memref<16x128xf32, #tpu.memory_space<vmem>>, vector<16x128xf32>
      tpu.vector_store %arg7[%c0_11, %c0_12], %12 {strides = array<i32>} : memref<16x128xf32, #tpu.memory_space<vmem>>, vector<16x128xf32>,
    } else {
    }
    %c0 = arith.constant 0 : index
    %c0_1 = arith.constant 0 : index
    %3 = vector.load %arg7[%c0, %c0_1] : memref<16x128xf32, #tpu.memory_space<vmem>>, vector<16x128xf32>
    %c0_2 = arith.constant 0 : index
    %c0_3 = arith.constant 0 : index
    %4 = vector.load %arg3[%c0_2, %c0_3] : memref<16x32xbf16, #tpu.memory_space<vmem>>, vector<16x32xbf16>
    %c0_4 = arith.constant 0 : index
    %c0_5 = arith.constant 0 : index
    %5 = vector.load %arg4[%c0_4, %c0_5] : memref<32x128xbf16, #tpu.memory_space<vmem>>, vector<32x128xbf16>
    %cst = arith.constant dense<0.000000e+00> : vector<16x128xf32>
    %6 = tpu.matmul %4, %5, %cst {dimension_numbers = #tpu.dot_dimension_numbers<[1], [0], [0], [1], [0, 0, 1, 1], [], []>} : vector<16x32xbf16>, vector<32x128xbf16>, vector<16x128xf32> -> vector<16x128xf32>
    %7 = arith.addf %3, %6 : vector<16x128xf32>
    %c0_6 = arith.constant 0 : index
    %c0_7 = arith.constant 0 : index
    %8 = vector.load %arg7[%c0_6, %c0_7] : memref<16x128xf32, #tpu.memory_space<vmem>>, vector<16x128xf32>
    tpu.vector_store %arg7[%c0_6, %c0_7], %7 {strides = array<i32>} : memref<16x128xf32, #tpu.memory_space<vmem>>, vector<16x128xf32>,
    %c0_i32_8 = arith.constant 0 : i32
    %9 = arith.cmpi eq, %arg2, %c0_i32_8 : i32
    %10 = arith.extui %9 : i1 to i32
    %c0_i32_9 = arith.constant 0 : i32
    %11 = arith.cmpi ne, %10, %c0_i32_9 : i32
    scf.if %11 {
      %c0_10 = arith.constant 0 : index
      %c0_11 = arith.constant 0 : index
      %12 = vector.load %arg7[%c0_10, %c0_11] : memref<16x128xf32, #tpu.memory_space<vmem>>, vector<16x128xf32>
      %c0_12 = arith.constant 0 : index
      %c0_13 = arith.constant 0 : index
      %13 = vector.load %arg5[%c0_12, %c0_13] : memref<1x128xf32, #tpu.memory_space<vmem>>, vector<1x128xf32>
      %14 = vector.broadcast %13 : vector<1x128xf32> to vector<16x128xf32>
      %15 = arith.addf %12, %14 : vector<16x128xf32>
      %cst_14 = arith.constant 5.000000e-01 : f32
      %16 = vector.broadcast %cst_14 : f32 to vector<16x128xf32>
      %17 = arith.mulf %16, %15 : vector<16x128xf32>
      %cst_15 = arith.constant 4.471500e-02 : f32
      %18 = vector.broadcast %cst_15 : f32 to vector<16x128xf32>
      %19 = arith.mulf %18, %15 : vector<16x128xf32>
      %20 = arith.mulf %19, %15 : vector<16x128xf32>
      %21 = arith.mulf %20, %15 : vector<16x128xf32>
      %22 = arith.addf %15, %21 : vector<16x128xf32>
      %cst_16 = arith.constant 0.797884583 : f32
      %23 = vector.broadcast %cst_16 : f32 to vector<16x128xf32>
      %24 = arith.mulf %23, %22 : vector<16x128xf32>
      %25 = math.tanh %24 : vector<16x128xf32>
      %cst_17 = arith.constant 1.000000e+00 : f32
      %26 = vector.broadcast %cst_17 : f32 to vector<16x128xf32>
      %27 = arith.addf %26, %25 : vector<16x128xf32>
      %28 = arith.mulf %17, %27 : vector<16x128xf32>
      %29 = arith.truncf %28 : vector<16x128xf32> to vector<16x128xbf16>
      %c0_18 = arith.constant 0 : index
      %c0_19 = arith.constant 0 : index
      %30 = vector.load %arg6[%c0_18, %c0_19] : memref<16x128xbf16, #tpu.memory_space<vmem>>, vector<16x128xbf16>
      tpu.vector_store %arg6[%c0_18, %c0_19], %29 {strides = array<i32>} : memref<16x128xbf16, #tpu.memory_space<vmem>>, vector<16x128xbf16>,
    } else {
    }
    return
  }
  func.func @transform_0(%arg0: i32, %arg1: i32, %arg2: i32) -> (i32, i32) {
    %c0_i32 = arith.constant 0 : i32
    return %arg0, %arg2 : i32, i32
  }
  func.func @transform_1(%arg0: i32, %arg1: i32, %arg2: i32) -> (i32, i32) {
    %c0_i32 = arith.constant 0 : i32
    return %arg2, %arg1 : i32, i32
  }
  func.func @transform_2(%arg0: i32, %arg1: i32, %arg2: i32) -> (i32, i32) {
    %c0_i32 = arith.constant 0 : i32
    %c0_i32_0 = arith.constant 0 : i32
    return %c0_i32, %arg1 : i32, i32
  }
  func.func @transform_3(%arg0: i32, %arg1: i32, %arg2: i32) -> (i32, i32) {
    %c0_i32 = arith.constant 0 : i32
    return %arg0, %arg1 : i32, i32
  }
}

module attributes {stable_mosaic.version = 11 : i64} {
  func.func @_matmul_res_ln_kernel(%arg0: i32, %arg1: i32, %arg2: memref<16x128xbf16, #tpu.memory_space<vmem>>, %arg3: memref<128x32xbf16, #tpu.memory_space<vmem>>, %arg4: memref<1x32xf32, #tpu.memory_space<vmem>>, %arg5: memref<16x32xf32, #tpu.memory_space<vmem>>, %arg6: memref<1x32xf32, #tpu.memory_space<vmem>>, %arg7: memref<1x32xf32, #tpu.memory_space<vmem>>, %arg8: memref<16x32xf32, #tpu.memory_space<vmem>>, %arg9: memref<16x32xbf16, #tpu.memory_space<vmem>>, %arg10: memref<16x32xf32, #tpu.memory_space<vmem>>) attributes {dimension_semantics = [#tpu.dimension_semantics<parallel>, #tpu.dimension_semantics<arbitrary>], iteration_bounds = array<i64: 1, 1>, scalar_prefetch = 0 : i64, scratch_operands = 1 : i64, tpu.core_type = #tpu.core_type<tc>, window_params = [{transform_indices = @transform_0, window_bounds = array<i64: 16, 128>}, {transform_indices = @transform_1, window_bounds = array<i64: 128, 32>}, {pipeline_mode = #tpu.pipeline_mode<synchronous>, transform_indices = @transform_2, window_bounds = array<i64: 1, 32>}, {transform_indices = @transform_3, window_bounds = array<i64: 16, 32>}, {pipeline_mode = #tpu.pipeline_mode<synchronous>, transform_indices = @transform_4, window_bounds = array<i64: 1, 32>}, {pipeline_mode = #tpu.pipeline_mode<synchronous>, transform_indices = @transform_5, window_bounds = array<i64: 1, 32>}, {transform_indices = @transform_6, window_bounds = array<i64: 16, 32>}, {transform_indices = @transform_7, window_bounds = array<i64: 16, 32>}]} {
    %c0_i32 = arith.constant 0 : i32
    %0 = arith.cmpi eq, %arg1, %c0_i32 : i32
    %1 = arith.extui %0 : i1 to i32
    %c0_i32_0 = arith.constant 0 : i32
    %2 = arith.cmpi ne, %1, %c0_i32_0 : i32
    scf.if %2 {
      %cst_10 = arith.constant 0.000000e+00 : f32
      %12 = vector.broadcast %cst_10 : f32 to vector<16x32xf32>
      %c0_11 = arith.constant 0 : index
      %c0_12 = arith.constant 0 : index
      %13 = vector.load %arg10[%c0_11, %c0_12] : memref<16x32xf32, #tpu.memory_space<vmem>>, vector<16x32xf32>
      tpu.vector_store %arg10[%c0_11, %c0_12], %12 {strides = array<i32>} : memref<16x32xf32, #tpu.memory_space<vmem>>, vector<16x32xf32>,
    } else {
    }
    %c0 = arith.constant 0 : index
    %c0_1 = arith.constant 0 : index
    %3 = vector.load %arg10[%c0, %c0_1] : memref<16x32xf32, #tpu.memory_space<vmem>>, vector<16x32xf32>
    %c0_2 = arith.constant 0 : index
    %c0_3 = arith.constant 0 : index
    %4 = vector.load %arg2[%c0_2, %c0_3] : memref<16x128xbf16, #tpu.memory_space<vmem>>, vector<16x128xbf16>
    %c0_4 = arith.constant 0 : index
    %c0_5 = arith.constant 0 : index
    %5 = vector.load %arg3[%c0_4, %c0_5] : memref<128x32xbf16, #tpu.memory_space<vmem>>, vector<128x32xbf16>
    %cst = arith.constant dense<0.000000e+00> : vector<16x32xf32>
    %6 = tpu.matmul %4, %5, %cst {dimension_numbers = #tpu.dot_dimension_numbers<[1], [0], [0], [1], [0, 0, 1, 1], [], []>} : vector<16x128xbf16>, vector<128x32xbf16>, vector<16x32xf32> -> vector<16x32xf32>
    %7 = arith.addf %3, %6 : vector<16x32xf32>
    %c0_6 = arith.constant 0 : index
    %c0_7 = arith.constant 0 : index
    %8 = vector.load %arg10[%c0_6, %c0_7] : memref<16x32xf32, #tpu.memory_space<vmem>>, vector<16x32xf32>
    tpu.vector_store %arg10[%c0_6, %c0_7], %7 {strides = array<i32>} : memref<16x32xf32, #tpu.memory_space<vmem>>, vector<16x32xf32>,
    %c0_i32_8 = arith.constant 0 : i32
    %9 = arith.cmpi eq, %arg1, %c0_i32_8 : i32
    %10 = arith.extui %9 : i1 to i32
    %c0_i32_9 = arith.constant 0 : i32
    %11 = arith.cmpi ne, %10, %c0_i32_9 : i32
    scf.if %11 {
      %c0_10 = arith.constant 0 : index
      %c0_11 = arith.constant 0 : index
      %12 = vector.load %arg10[%c0_10, %c0_11] : memref<16x32xf32, #tpu.memory_space<vmem>>, vector<16x32xf32>
      %c0_12 = arith.constant 0 : index
      %c0_13 = arith.constant 0 : index
      %13 = vector.load %arg4[%c0_12, %c0_13] : memref<1x32xf32, #tpu.memory_space<vmem>>, vector<1x32xf32>
      %14 = vector.broadcast %13 : vector<1x32xf32> to vector<16x32xf32>
      %15 = arith.addf %12, %14 : vector<16x32xf32>
      %c0_14 = arith.constant 0 : index
      %c0_15 = arith.constant 0 : index
      %16 = vector.load %arg5[%c0_14, %c0_15] : memref<16x32xf32, #tpu.memory_space<vmem>>, vector<16x32xf32>
      %17 = arith.addf %15, %16 : vector<16x32xf32>
      %c0_16 = arith.constant 0 : index
      %c0_17 = arith.constant 0 : index
      %18 = vector.load %arg8[%c0_16, %c0_17] : memref<16x32xf32, #tpu.memory_space<vmem>>, vector<16x32xf32>
      tpu.vector_store %arg8[%c0_16, %c0_17], %17 {strides = array<i32>} : memref<16x32xf32, #tpu.memory_space<vmem>>, vector<16x32xf32>,
      %cst_18 = arith.constant dense<0.000000e+00> : vector<16xf32>
      %19 = vector.multi_reduction <add>, %17, %cst_18 [1] : vector<16x32xf32> to vector<16xf32>
      %20 = vector.shape_cast %19 : vector<16xf32> to vector<16x1xf32>
      %cst_19 = arith.constant 3.200000e+01 : f32
      %21 = vector.broadcast %cst_19 : f32 to vector<16x1xf32>
      %22 = arith.divf %20, %21 : vector<16x1xf32>
      %23 = vector.broadcast %22 : vector<16x1xf32> to vector<16x32xf32>
      %24 = arith.subf %17, %23 : vector<16x32xf32>
      %25 = arith.mulf %24, %24 : vector<16x32xf32>
      %cst_20 = arith.constant dense<0.000000e+00> : vector<16xf32>
      %26 = vector.multi_reduction <add>, %25, %cst_20 [1] : vector<16x32xf32> to vector<16xf32>
      %27 = vector.shape_cast %26 : vector<16xf32> to vector<16x1xf32>
      %cst_21 = arith.constant 3.200000e+01 : f32
      %28 = vector.broadcast %cst_21 : f32 to vector<16x1xf32>
      %29 = arith.divf %27, %28 : vector<16x1xf32>
      %cst_22 = arith.constant 9.99999974E-6 : f32
      %30 = vector.broadcast %cst_22 : f32 to vector<16x1xf32>
      %31 = arith.addf %29, %30 : vector<16x1xf32>
      %32 = math.rsqrt %31 : vector<16x1xf32>
      %33 = vector.broadcast %22 : vector<16x1xf32> to vector<16x32xf32>
      %34 = arith.subf %17, %33 : vector<16x32xf32>
      %35 = vector.broadcast %32 : vector<16x1xf32> to vector<16x32xf32>
      %36 = arith.mulf %34, %35 : vector<16x32xf32>
      %c0_23 = arith.constant 0 : index
      %c0_24 = arith.constant 0 : index
      %37 = vector.load %arg6[%c0_23, %c0_24] : memref<1x32xf32, #tpu.memory_space<vmem>>, vector<1x32xf32>
      %38 = vector.broadcast %37 : vector<1x32xf32> to vector<16x32xf32>
      %39 = arith.mulf %36, %38 : vector<16x32xf32>
      %c0_25 = arith.constant 0 : index
      %c0_26 = arith.constant 0 : index
      %40 = vector.load %arg7[%c0_25, %c0_26] : memref<1x32xf32, #tpu.memory_space<vmem>>, vector<1x32xf32>
      %41 = vector.broadcast %40 : vector<1x32xf32> to vector<16x32xf32>
      %42 = arith.addf %39, %41 : vector<16x32xf32>
      %43 = arith.truncf %42 : vector<16x32xf32> to vector<16x32xbf16>
      %c0_27 = arith.constant 0 : index
      %c0_28 = arith.constant 0 : index
      %44 = vector.load %arg9[%c0_27, %c0_28] : memref<16x32xbf16, #tpu.memory_space<vmem>>, vector<16x32xbf16>
      tpu.vector_store %arg9[%c0_27, %c0_28], %43 {strides = array<i32>} : memref<16x32xbf16, #tpu.memory_space<vmem>>, vector<16x32xbf16>,
    } else {
    }
    return
  }
  func.func @transform_0(%arg0: i32, %arg1: i32) -> (i32, i32) {
    %c0_i32 = arith.constant 0 : i32
    return %arg0, %arg1 : i32, i32
  }
  func.func @transform_1(%arg0: i32, %arg1: i32) -> (i32, i32) {
    %c0_i32 = arith.constant 0 : i32
    %c0_i32_0 = arith.constant 0 : i32
    return %arg1, %c0_i32 : i32, i32
  }
  func.func @transform_2(%arg0: i32, %arg1: i32) -> (i32, i32) {
    %c0_i32 = arith.constant 0 : i32
    %c0_i32_0 = arith.constant 0 : i32
    %c0_i32_1 = arith.constant 0 : i32
    return %c0_i32, %c0_i32_0 : i32, i32
  }
  func.func @transform_3(%arg0: i32, %arg1: i32) -> (i32, i32) {
    %c0_i32 = arith.constant 0 : i32
    %c0_i32_0 = arith.constant 0 : i32
    return %arg0, %c0_i32 : i32, i32
  }
  func.func @transform_4(%arg0: i32, %arg1: i32) -> (i32, i32) {
    %c0_i32 = arith.constant 0 : i32
    %c0_i32_0 = arith.constant 0 : i32
    %c0_i32_1 = arith.constant 0 : i32
    return %c0_i32, %c0_i32_0 : i32, i32
  }
  func.func @transform_5(%arg0: i32, %arg1: i32) -> (i32, i32) {
    %c0_i32 = arith.constant 0 : i32
    %c0_i32_0 = arith.constant 0 : i32
    %c0_i32_1 = arith.constant 0 : i32
    return %c0_i32, %c0_i32_0 : i32, i32
  }
  func.func @transform_6(%arg0: i32, %arg1: i32) -> (i32, i32) {
    %c0_i32 = arith.constant 0 : i32
    %c0_i32_0 = arith.constant 0 : i32
    return %arg0, %c0_i32 : i32, i32
  }
  func.func @transform_7(%arg0: i32, %arg1: i32) -> (i32, i32) {
    %c0_i32 = arith.constant 0 : i32
    %c0_i32_0 = arith.constant 0 : i32
    return %arg0, %c0_i32 : i32, i32
  }
}

module attributes {stable_mosaic.version = 11 : i64} {
  func.func @_matmul_res_ln_kernel(%arg0: i32, %arg1: i32, %arg2: memref<16x128xbf16, #tpu.memory_space<vmem>>, %arg3: memref<128x32xbf16, #tpu.memory_space<vmem>>, %arg4: memref<1x32xf32, #tpu.memory_space<vmem>>, %arg5: memref<16x32xf32, #tpu.memory_space<vmem>>, %arg6: memref<1x32xf32, #tpu.memory_space<vmem>>, %arg7: memref<1x32xf32, #tpu.memory_space<vmem>>, %arg8: memref<16x32xf32, #tpu.memory_space<vmem>>, %arg9: memref<16x32xbf16, #tpu.memory_space<vmem>>, %arg10: memref<16x32xf32, #tpu.memory_space<vmem>>) attributes {dimension_semantics = [#tpu.dimension_semantics<parallel>, #tpu.dimension_semantics<arbitrary>], iteration_bounds = array<i64: 1, 1>, scalar_prefetch = 0 : i64, scratch_operands = 1 : i64, tpu.core_type = #tpu.core_type<tc>, window_params = [{transform_indices = @transform_0, window_bounds = array<i64: 16, 128>}, {transform_indices = @transform_1, window_bounds = array<i64: 128, 32>}, {pipeline_mode = #tpu.pipeline_mode<synchronous>, transform_indices = @transform_2, window_bounds = array<i64: 1, 32>}, {transform_indices = @transform_3, window_bounds = array<i64: 16, 32>}, {pipeline_mode = #tpu.pipeline_mode<synchronous>, transform_indices = @transform_4, window_bounds = array<i64: 1, 32>}, {pipeline_mode = #tpu.pipeline_mode<synchronous>, transform_indices = @transform_5, window_bounds = array<i64: 1, 32>}, {transform_indices = @transform_6, window_bounds = array<i64: 16, 32>}, {transform_indices = @transform_7, window_bounds = array<i64: 16, 32>}]} {
    %c0_i32 = arith.constant 0 : i32
    %0 = arith.cmpi eq, %arg1, %c0_i32 : i32
    %1 = arith.extui %0 : i1 to i32
    %c0_i32_0 = arith.constant 0 : i32
    %2 = arith.cmpi ne, %1, %c0_i32_0 : i32
    scf.if %2 {
      %cst_10 = arith.constant 0.000000e+00 : f32
      %12 = vector.broadcast %cst_10 : f32 to vector<16x32xf32>
      %c0_11 = arith.constant 0 : index
      %c0_12 = arith.constant 0 : index
      %13 = vector.load %arg10[%c0_11, %c0_12] : memref<16x32xf32, #tpu.memory_space<vmem>>, vector<16x32xf32>
      tpu.vector_store %arg10[%c0_11, %c0_12], %12 {strides = array<i32>} : memref<16x32xf32, #tpu.memory_space<vmem>>, vector<16x32xf32>,
    } else {
    }
    %c0 = arith.constant 0 : index
    %c0_1 = arith.constant 0 : index
    %3 = vector.load %arg10[%c0, %c0_1] : memref<16x32xf32, #tpu.memory_space<vmem>>, vector<16x32xf32>
    %c0_2 = arith.constant 0 : index
    %c0_3 = arith.constant 0 : index
    %4 = vector.load %arg2[%c0_2, %c0_3] : memref<16x128xbf16, #tpu.memory_space<vmem>>, vector<16x128xbf16>
    %c0_4 = arith.constant 0 : index
    %c0_5 = arith.constant 0 : index
    %5 = vector.load %arg3[%c0_4, %c0_5] : memref<128x32xbf16, #tpu.memory_space<vmem>>, vector<128x32xbf16>
    %cst = arith.constant dense<0.000000e+00> : vector<16x32xf32>
    %6 = tpu.matmul %4, %5, %cst {dimension_numbers = #tpu.dot_dimension_numbers<[1], [0], [0], [1], [0, 0, 1, 1], [], []>} : vector<16x128xbf16>, vector<128x32xbf16>, vector<16x32xf32> -> vector<16x32xf32>
    %7 = arith.addf %3, %6 : vector<16x32xf32>
    %c0_6 = arith.constant 0 : index
    %c0_7 = arith.constant 0 : index
    %8 = vector.load %arg10[%c0_6, %c0_7] : memref<16x32xf32, #tpu.memory_space<vmem>>, vector<16x32xf32>
    tpu.vector_store %arg10[%c0_6, %c0_7], %7 {strides = array<i32>} : memref<16x32xf32, #tpu.memory_space<vmem>>, vector<16x32xf32>,
    %c0_i32_8 = arith.constant 0 : i32
    %9 = arith.cmpi eq, %arg1, %c0_i32_8 : i32
    %10 = arith.extui %9 : i1 to i32
    %c0_i32_9 = arith.constant 0 : i32
    %11 = arith.cmpi ne, %10, %c0_i32_9 : i32
    scf.if %11 {
      %c0_10 = arith.constant 0 : index
      %c0_11 = arith.constant 0 : index
      %12 = vector.load %arg10[%c0_10, %c0_11] : memref<16x32xf32, #tpu.memory_space<vmem>>, vector<16x32xf32>
      %c0_12 = arith.constant 0 : index
      %c0_13 = arith.constant 0 : index
      %13 = vector.load %arg4[%c0_12, %c0_13] : memref<1x32xf32, #tpu.memory_space<vmem>>, vector<1x32xf32>
      %14 = vector.broadcast %13 : vector<1x32xf32> to vector<16x32xf32>
      %15 = arith.addf %12, %14 : vector<16x32xf32>
      %c0_14 = arith.constant 0 : index
      %c0_15 = arith.constant 0 : index
      %16 = vector.load %arg5[%c0_14, %c0_15] : memref<16x32xf32, #tpu.memory_space<vmem>>, vector<16x32xf32>
      %17 = arith.addf %15, %16 : vector<16x32xf32>
      %c0_16 = arith.constant 0 : index
      %c0_17 = arith.constant 0 : index
      %18 = vector.load %arg8[%c0_16, %c0_17] : memref<16x32xf32, #tpu.memory_space<vmem>>, vector<16x32xf32>
      tpu.vector_store %arg8[%c0_16, %c0_17], %17 {strides = array<i32>} : memref<16x32xf32, #tpu.memory_space<vmem>>, vector<16x32xf32>,
      %cst_18 = arith.constant dense<0.000000e+00> : vector<16xf32>
      %19 = vector.multi_reduction <add>, %17, %cst_18 [1] : vector<16x32xf32> to vector<16xf32>
      %20 = vector.shape_cast %19 : vector<16xf32> to vector<16x1xf32>
      %cst_19 = arith.constant 3.200000e+01 : f32
      %21 = vector.broadcast %cst_19 : f32 to vector<16x1xf32>
      %22 = arith.divf %20, %21 : vector<16x1xf32>
      %23 = vector.broadcast %22 : vector<16x1xf32> to vector<16x32xf32>
      %24 = arith.subf %17, %23 : vector<16x32xf32>
      %25 = arith.mulf %24, %24 : vector<16x32xf32>
      %cst_20 = arith.constant dense<0.000000e+00> : vector<16xf32>
      %26 = vector.multi_reduction <add>, %25, %cst_20 [1] : vector<16x32xf32> to vector<16xf32>
      %27 = vector.shape_cast %26 : vector<16xf32> to vector<16x1xf32>
      %cst_21 = arith.constant 3.200000e+01 : f32
      %28 = vector.broadcast %cst_21 : f32 to vector<16x1xf32>
      %29 = arith.divf %27, %28 : vector<16x1xf32>
      %cst_22 = arith.constant 9.99999974E-6 : f32
      %30 = vector.broadcast %cst_22 : f32 to vector<16x1xf32>
      %31 = arith.addf %29, %30 : vector<16x1xf32>
      %32 = math.rsqrt %31 : vector<16x1xf32>
      %33 = vector.broadcast %22 : vector<16x1xf32> to vector<16x32xf32>
      %34 = arith.subf %17, %33 : vector<16x32xf32>
      %35 = vector.broadcast %32 : vector<16x1xf32> to vector<16x32xf32>
      %36 = arith.mulf %34, %35 : vector<16x32xf32>
      %c0_23 = arith.constant 0 : index
      %c0_24 = arith.constant 0 : index
      %37 = vector.load %arg6[%c0_23, %c0_24] : memref<1x32xf32, #tpu.memory_space<vmem>>, vector<1x32xf32>
      %38 = vector.broadcast %37 : vector<1x32xf32> to vector<16x32xf32>
      %39 = arith.mulf %36, %38 : vector<16x32xf32>
      %c0_25 = arith.constant 0 : index
      %c0_26 = arith.constant 0 : index
      %40 = vector.load %arg7[%c0_25, %c0_26] : memref<1x32xf32, #tpu.memory_space<vmem>>, vector<1x32xf32>
      %41 = vector.broadcast %40 : vector<1x32xf32> to vector<16x32xf32>
      %42 = arith.addf %39, %41 : vector<16x32xf32>
      %43 = arith.truncf %42 : vector<16x32xf32> to vector<16x32xbf16>
      %c0_27 = arith.constant 0 : index
      %c0_28 = arith.constant 0 : index
      %44 = vector.load %arg9[%c0_27, %c0_28] : memref<16x32xbf16, #tpu.memory_space<vmem>>, vector<16x32xbf16>
      tpu.vector_store %arg9[%c0_27, %c0_28], %43 {strides = array<i32>} : memref<16x32xbf16, #tpu.memory_space<vmem>>, vector<16x32xbf16>,
    } else {
    }
    return
  }
  func.func @transform_0(%arg0: i32, %arg1: i32) -> (i32, i32) {
    %c0_i32 = arith.constant 0 : i32
    return %arg0, %arg1 : i32, i32
  }
  func.func @transform_1(%arg0: i32, %arg1: i32) -> (i32, i32) {
    %c0_i32 = arith.constant 0 : i32
    %c0_i32_0 = arith.constant 0 : i32
    return %arg1, %c0_i32 : i32, i32
  }
  func.func @transform_2(%arg0: i32, %arg1: i32) -> (i32, i32) {
    %c0_i32 = arith.constant 0 : i32
    %c0_i32_0 = arith.constant 0 : i32
    %c0_i32_1 = arith.constant 0 : i32
    return %c0_i32, %c0_i32_0 : i32, i32
  }
  func.func @transform_3(%arg0: i32, %arg1: i32) -> (i32, i32) {
    %c0_i32 = arith.constant 0 : i32
    %c0_i32_0 = arith.constant 0 : i32
    return %arg0, %c0_i32 : i32, i32
  }
  func.func @transform_4(%arg0: i32, %arg1: i32) -> (i32, i32) {
    %c0_i32 = arith.constant 0 : i32
    %c0_i32_0 = arith.constant 0 : i32
    %c0_i32_1 = arith.constant 0 : i32
    return %c0_i32, %c0_i32_0 : i32, i32
  }
  func.func @transform_5(%arg0: i32, %arg1: i32) -> (i32, i32) {
    %c0_i32 = arith.constant 0 : i32
    %c0_i32_0 = arith.constant 0 : i32
    %c0_i32_1 = arith.constant 0 : i32
    return %c0_i32, %c0_i32_0 : i32, i32
  }
  func.func @transform_6(%arg0: i32, %arg1: i32) -> (i32, i32) {
    %c0_i32 = arith.constant 0 : i32
    %c0_i32_0 = arith.constant 0 : i32
    return %arg0, %c0_i32 : i32, i32
  }
  func.func @transform_7(%arg0: i32, %arg1: i32) -> (i32, i32) {
    %c0_i32 = arith.constant 0 : i32
    %c0_i32_0 = arith.constant 0 : i32
    return %arg0, %c0_i32 : i32, i32
  }
}

module attributes {stable_mosaic.version = 11 : i64} {
  func.func @_matmul_kernel(%arg0: i32, %arg1: i32, %arg2: i32, %arg3: memref<16x32xbf16, #tpu.memory_space<vmem>>, %arg4: memref<32x8xbf16, #tpu.memory_space<vmem>>, %arg5: memref<1x8xf32, #tpu.memory_space<vmem>>, %arg6: memref<16x8xf32, #tpu.memory_space<vmem>>, %arg7: memref<16x8xf32, #tpu.memory_space<vmem>>) attributes {dimension_semantics = [#tpu.dimension_semantics<parallel>, #tpu.dimension_semantics<parallel>, #tpu.dimension_semantics<arbitrary>], iteration_bounds = array<i64: 1, 1, 1>, scalar_prefetch = 0 : i64, scratch_operands = 1 : i64, tpu.core_type = #tpu.core_type<tc>, window_params = [{transform_indices = @transform_0, window_bounds = array<i64: 16, 32>}, {transform_indices = @transform_1, window_bounds = array<i64: 32, 8>}, {transform_indices = @transform_2, window_bounds = array<i64: 1, 8>}, {transform_indices = @transform_3, window_bounds = array<i64: 16, 8>}]} {
    %c0_i32 = arith.constant 0 : i32
    %0 = arith.cmpi eq, %arg2, %c0_i32 : i32
    %1 = arith.extui %0 : i1 to i32
    %c0_i32_0 = arith.constant 0 : i32
    %2 = arith.cmpi ne, %1, %c0_i32_0 : i32
    scf.if %2 {
      %cst_10 = arith.constant 0.000000e+00 : f32
      %12 = vector.broadcast %cst_10 : f32 to vector<16x8xf32>
      %c0_11 = arith.constant 0 : index
      %c0_12 = arith.constant 0 : index
      %13 = vector.load %arg7[%c0_11, %c0_12] : memref<16x8xf32, #tpu.memory_space<vmem>>, vector<16x8xf32>
      tpu.vector_store %arg7[%c0_11, %c0_12], %12 {strides = array<i32>} : memref<16x8xf32, #tpu.memory_space<vmem>>, vector<16x8xf32>,
    } else {
    }
    %c0 = arith.constant 0 : index
    %c0_1 = arith.constant 0 : index
    %3 = vector.load %arg7[%c0, %c0_1] : memref<16x8xf32, #tpu.memory_space<vmem>>, vector<16x8xf32>
    %c0_2 = arith.constant 0 : index
    %c0_3 = arith.constant 0 : index
    %4 = vector.load %arg3[%c0_2, %c0_3] : memref<16x32xbf16, #tpu.memory_space<vmem>>, vector<16x32xbf16>
    %c0_4 = arith.constant 0 : index
    %c0_5 = arith.constant 0 : index
    %5 = vector.load %arg4[%c0_4, %c0_5] : memref<32x8xbf16, #tpu.memory_space<vmem>>, vector<32x8xbf16>
    %cst = arith.constant dense<0.000000e+00> : vector<16x8xf32>
    %6 = tpu.matmul %4, %5, %cst {dimension_numbers = #tpu.dot_dimension_numbers<[1], [0], [0], [1], [0, 0, 1, 1], [], []>} : vector<16x32xbf16>, vector<32x8xbf16>, vector<16x8xf32> -> vector<16x8xf32>
    %7 = arith.addf %3, %6 : vector<16x8xf32>
    %c0_6 = arith.constant 0 : index
    %c0_7 = arith.constant 0 : index
    %8 = vector.load %arg7[%c0_6, %c0_7] : memref<16x8xf32, #tpu.memory_space<vmem>>, vector<16x8xf32>
    tpu.vector_store %arg7[%c0_6, %c0_7], %7 {strides = array<i32>} : memref<16x8xf32, #tpu.memory_space<vmem>>, vector<16x8xf32>,
    %c0_i32_8 = arith.constant 0 : i32
    %9 = arith.cmpi eq, %arg2, %c0_i32_8 : i32
    %10 = arith.extui %9 : i1 to i32
    %c0_i32_9 = arith.constant 0 : i32
    %11 = arith.cmpi ne, %10, %c0_i32_9 : i32
    scf.if %11 {
      %c0_10 = arith.constant 0 : index
      %c0_11 = arith.constant 0 : index
      %12 = vector.load %arg7[%c0_10, %c0_11] : memref<16x8xf32, #tpu.memory_space<vmem>>, vector<16x8xf32>
      %c0_12 = arith.constant 0 : index
      %c0_13 = arith.constant 0 : index
      %13 = vector.load %arg5[%c0_12, %c0_13] : memref<1x8xf32, #tpu.memory_space<vmem>>, vector<1x8xf32>
      %14 = vector.broadcast %13 : vector<1x8xf32> to vector<16x8xf32>
      %15 = arith.addf %12, %14 : vector<16x8xf32>
      %c0_14 = arith.constant 0 : index
      %c0_15 = arith.constant 0 : index
      %16 = vector.load %arg6[%c0_14, %c0_15] : memref<16x8xf32, #tpu.memory_space<vmem>>, vector<16x8xf32>
      tpu.vector_store %arg6[%c0_14, %c0_15], %15 {strides = array<i32>} : memref<16x8xf32, #tpu.memory_space<vmem>>, vector<16x8xf32>,
    } else {
    }
    return
  }
  func.func @transform_0(%arg0: i32, %arg1: i32, %arg2: i32) -> (i32, i32) {
    %c0_i32 = arith.constant 0 : i32
    return %arg0, %arg2 : i32, i32
  }
  func.func @transform_1(%arg0: i32, %arg1: i32, %arg2: i32) -> (i32, i32) {
    %c0_i32 = arith.constant 0 : i32
    return %arg2, %arg1 : i32, i32
  }
  func.func @transform_2(%arg0: i32, %arg1: i32, %arg2: i32) -> (i32, i32) {
    %c0_i32 = arith.constant 0 : i32
    %c0_i32_0 = arith.constant 0 : i32
    return %c0_i32, %arg1 : i32, i32
  }
  func.func @transform_3(%arg0: i32, %arg1: i32, %arg2: i32) -> (i32, i32) {
    %c0_i32 = arith.constant 0 : i32
    return %arg0, %arg1 : i32, i32
  }
}

</mosaic_0001>

<llo_original>
// kernel: gpt_forward.12
$region0: #{gpt_forward.12}
  #allocation0 [shape = 'u32[]', space=smem, size = 0x4, offset = 0x4, fixed_abs, tag = 'smem constant byte address 0x4 - core index']
  #allocation1 [shape = 'u32[72,128]{1,0:T(1,128)}', space=vmem, size = 0x9000, scoped, tag = 'internal scratch']
  #allocation2 [shape = 'f32[16,32]{1,0:T(8,128)}', space=vmem, size = 0x2000, scoped, tag = 'scratch operand']
  %s0 = inlined_call_operand.vmem [shape: bf16[16,8], index: 0, kind: input, shape index: {}]
  %s1 = inlined_call_operand.vmem [shape: bf16[8,32], index: 1, kind: input, shape index: {}]
  %s2 = inlined_call_operand.vmem [shape: f32[1,32], index: 2, kind: input, shape index: {}]
  %s3 = inlined_call_operand.vmem [shape: f32[16,32], index: 3, kind: input, shape index: {}]
  %s4 = inlined_call_operand.vmem [shape: f32[1,32], index: 4, kind: input, shape index: {}]
  %s5 = inlined_call_operand.vmem [shape: f32[1,32], index: 5, kind: input, shape index: {}]
  %s6 = inlined_call_operand.vmem [shape: f32[16,32], index: 6, kind: output, shape index: {0}]
  %s7 = inlined_call_operand.vmem [shape: bf16[16,32], index: 7, kind: output, shape index: {1}]
  %8 = xla_tuple %s6, %s7
  %s9 = sld [smem:[#allocation0]]
  $region50: #{gpt_forward.12} parent=0
    _
  %s11 = ssub.s32 1, %s9
  %s12 = scalar_select 0, %s11, %s9
  // Predicated region
  $region2: #{gpt_forward.12} parent=0 // pred_check
    _
  $region3: #{gpt_forward.12} parent=0 // pred_check_branch
    %14 = sbr.rel (0) target = $region5
  $region4: #{gpt_forward.12} parent=0 // pred_region
    _
  $region5: #{gpt_forward.12} parent=0 // pred_fallthru
    _
  // Predicated region
  $region6: #{gpt_forward.12} parent=0 // pred_check
    _
  $region7: #{gpt_forward.12} parent=0 // pred_check_branch
    %16 = sbr.rel (0) target = $region9
  $region8: #{gpt_forward.12} parent=0 // pred_region
    _
  $region9: #{gpt_forward.12} parent=0 // pred_fallthru
    _
  // Predicated region
  $region10: #{gpt_forward.12} parent=0 // pred_check
    _
  $region11: #{gpt_forward.12} parent=0 // pred_check_branch
    %18 = sbr.rel (0) target = $region13
  $region12: #{gpt_forward.12} parent=0 // pred_region
    _
  $region13: #{gpt_forward.12} parent=0 // pred_fallthru
    _
  // Predicated region
  $region14: #{gpt_forward.12} parent=0 // pred_check
    _
  $region15: #{gpt_forward.12} parent=0 // pred_check_branch
    %20 = sbr.rel (0) target = $region17
  $region16: #{gpt_forward.12} parent=0 // pred_region
    _
  $region17: #{gpt_forward.12} parent=0 // pred_fallthru
    _
  // Predicated region
  $region18: #{gpt_forward.12} parent=0 // pred_check
    _
  $region19: #{gpt_forward.12} parent=0 // pred_check_branch
    %22 = sbr.rel (0) target = $region21
  $region20: #{gpt_forward.12} parent=0 // pred_region
    _
  $region21: #{gpt_forward.12} parent=0 // pred_fallthru
    _
  // Predicated region
  $region22: #{gpt_forward.12} parent=0 // pred_check
    _
  $region23: #{gpt_forward.12} parent=0 // pred_check_branch
    %24 = sbr.rel (0) target = $region25
  $region24: #{gpt_forward.12} parent=0 // pred_region
    _
  $region25: #{gpt_forward.12} parent=0 // pred_fallthru
    _
  %p26 = scmp.eq.s32.totalorder 0, 0
  // Predicated region
  $region26: #{gpt_forward.12} parent=0 // pred_check
    %p27 = pneg %p26
  $region27: #{gpt_forward.12} parent=0 // pred_check_branch
    %29 = sbr.rel (%p27) target = $region29
  $region28: #{gpt_forward.12} parent=0 // pred_region
    %vm30 = vcmask 261120
    %31 = vst.msk [vmem:[#allocation2] sm:$0xff] %vm30, 0.0
    %32 = vst.msk [vmem:[#allocation2 + $0x8] sm:$0xff] %vm30, 0.0
  $region29: #{gpt_forward.12} parent=0 // pred_fallthru
    _
  %v33 = vld [vmem:[#allocation2] sm:$0xff]
  %v34 = vld [vmem:[#allocation2 + $0x8] sm:$0xff]
  %v35 = vld [vmem:[%s0] sm:$0xf]
  %v36 = vld [vmem:[%s0 + $0x4] sm:$0xf]
  %v37 = vld [vmem:[%s1] sm:$0xf]
  %v40 = vunpack.c.l.b16 %v35
  %v41 = vunpack.c.l.b16 %v36
  %v42 = vpack.c.b16 %v41, %v40
  %vm43 = vcmask 64512
  %v45 = vsel %vm43, %v42, 0
  %vm47 = vcmask 1043456
  %v49 = vsel %vm47, %v37, 0
  %51 = vmatpush.bf16.msra.mxu0 0
  %52 = vmatpush.bf16.msra.mxu0 0
  %53 = vmatpush.bf16.msra.mxu0 0
  %54 = vmatpush.bf16.msra.mxu0 0
  %55 = vmatpush.bf16.msra.mxu0 0
  %56 = vmatpush.bf16.msra.mxu0 0
  %57 = vmatpush.bf16.msra.mxu0 0
  %58 = vmatpush.bf16.msra.mxu0 %v49
  %59 = vmatmul.bf16.gmra.mxu0 %v45
  %v60 = vpop.f32.mrf.mxu0
  %v61 = vadd.f32 0.0, %v60
  %v62 = vpop.f32.mrf.mxu0
  %v63 = vadd.f32 0.0, %v62
  %64 = vdwg.mxu0
  %v65 = vadd.f32 %v33, %v61
  %v66 = vadd.f32 %v34, %v63
  %vm67 = vcmask 261120
  %68 = vst.msk [vmem:[#allocation2] sm:$0xff] %vm67, %v65
  %69 = vst.msk [vmem:[#allocation2 + $0x8] sm:$0xff] %vm67, %v66
  // Predicated region
  $region30: #{gpt_forward.12} parent=0 // pred_check
    %p70 = pneg %p26
  $region31: #{gpt_forward.12} parent=0 // pred_check_branch
    %72 = sbr.rel (%p70) target = $region33
  $region32: #{gpt_forward.12} parent=0 // pred_region
    %v73 = vld [vmem:[#allocation2] sm:$0xff]
    %v74 = vld [vmem:[#allocation2 + $0x8] sm:$0xff]
    %v75 = vld [vmem:[%s2] sm:$0x1]
    %v77 = vperm.slane %v75, 0
    %v79 = vadd.f32 %v73, %v77
    %v80 = vadd.f32 %v74, %v77
    %v81 = vld [vmem:[%s3] sm:$0xff]
    %v82 = vld [vmem:[%s3 + $0x8] sm:$0xff]
    %v83 = vadd.f32 %v79, %v81
    %v84 = vadd.f32 %v80, %v82
    %85 = vst.msk [vmem:[%s6] sm:$0xff] %vm67, %v83
    %86 = vst.msk [vmem:[%s6 + $0x8] sm:$0xff] %vm67, %v84
    %v87 = vsel %vm67, %v83, 0.0
    %88 = vadd.xlane.f32.xlu0 %v87
    %v89 = vpop.xlane.xlu0 %88
    %v90 = vsel %vm67, %v84, 0.0
    %91 = vadd.xlane.f32.xlu0 %v90
    %v92 = vpop.xlane.xlu0 %91
    %v93 = vrcp.pop 32.0
    %v94 = vmul.f32 32.0, %v93
    %v95 = vsub.f32 1.0, %v94
    %v96 = vmul.f32 %v93, %v95
    %v97 = vadd.f32 %v93, %v96
    %vm98 = vweird.f32 %v93
    %v99 = vsel %vm98, %v93, %v97
    %v100 = vmul.f32 %v89, %v99
    %v101 = vmul.f32 %v92, %v99
    %v102 = vsub.f32 %v83, %v100
    %v103 = vsub.f32 %v84, %v101
    %v104 = vmul.f32 %v102, %v102
    %v105 = vmul.f32 %v103, %v103
    %v106 = vsel %vm67, %v104, 0.0
    %107 = vadd.xlane.f32.xlu0 %v106
    %v108 = vpop.xlane.xlu0 %107
    %v109 = vsel %vm67, %v105, 0.0
    %110 = vadd.xlane.f32.xlu0 %v109
    %v111 = vpop.xlane.xlu0 %110
    %v112 = vmul.f32 %v108, %v99
    %v113 = vmul.f32 %v111, %v99
    %v114 = vadd.f32 %v112, 1e-05
    %v115 = vadd.f32 %v113, 1e-05
    %v116 = vrsqrt.pop %v114
    %v117 = vmul.f32 %v116, %v114
    %v118 = vmul.f32 %v117, %v116
    %v119 = vmul.f32 0.5, %v118
    %v120 = vsub.f32 1.5, %v119
    %v121 = vmul.f32 %v116, %v120
    %vm122 = vweird.f32 %v114
    %vm123 = vweird.f32 %v116
    %vm124 = vmor %vm122, %vm123
    %v125 = vsel %vm124, %v116, %v121
    %v126 = vrsqrt.pop %v115
    %v127 = vmul.f32 %v126, %v115
    %v128 = vmul.f32 %v127, %v126
    %v129 = vmul.f32 0.5, %v128
    %v130 = vsub.f32 1.5, %v129
    %v131 = vmul.f32 %v126, %v130
    %vm132 = vweird.f32 %v115
    %vm133 = vweird.f32 %v126
    %vm134 = vmor %vm132, %vm133
    %v135 = vsel %vm134, %v126, %v131
    %v136 = vmul.f32 %v102, %v125
    %v137 = vmul.f32 %v103, %v135
    %v138 = vld [vmem:[%s4] sm:$0x1]
    %v140 = vperm.slane %v138, 0
    %v142 = vmul.f32 %v136, %v140
    %v143 = vmul.f32 %v137, %v140
    %v144 = vld [vmem:[%s5] sm:$0x1]
    %v146 = vperm.slane %v144, 0
    %v148 = vadd.f32 %v142, %v146
    %v149 = vadd.f32 %v143, %v146
    %v150 = vpack.c.bf16 %v148, %v148
    %v151 = vpack.c.bf16 %v149, %v149
    %vm152 = vcmask 257024
    %153 = vst.msk [vmem:[%s7] sm:$0xf] %vm152, %v150
    %154 = vst.msk [vmem:[%s7 + $0x4] sm:$0xf] %vm152, %v151
  $region33: #{gpt_forward.12} parent=0 // pred_fallthru
    _
  // Predicated region
  $region34: #{gpt_forward.12} parent=0 // pred_check
    _
  $region35: #{gpt_forward.12} parent=0 // pred_check_branch
    %156 = sbr.rel (0) target = $region37
  $region36: #{gpt_forward.12} parent=0 // pred_region
    _
  $region37: #{gpt_forward.12} parent=0 // pred_fallthru
    _
  // Predicated region
  $region38: #{gpt_forward.12} parent=0 // pred_check
    _
  $region39: #{gpt_forward.12} parent=0 // pred_check_branch
    %158 = sbr.rel (0) target = $region41
  $region40: #{gpt_forward.12} parent=0 // pred_region
    _
  $region41: #{gpt_forward.12} parent=0 // pred_fallthru
    _
  // Predicated region
  $region42: #{gpt_forward.12} parent=0 // pred_check
    _
  $region43: #{gpt_forward.12} parent=0 // pred_check_branch
    %160 = sbr.rel (0) target = $region45
  $region44: #{gpt_forward.12} parent=0 // pred_region
    _
  $region45: #{gpt_forward.12} parent=0 // pred_fallthru
    _
  // Predicated region
  $region46: #{gpt_forward.12} parent=0 // pred_check
    _
  $region47: #{gpt_forward.12} parent=0 // pred_check_branch
    %162 = sbr.rel (0) target = $region49
  $region48: #{gpt_forward.12} parent=0 // pred_region
    _
  $region49: #{gpt_forward.12} parent=0 // pred_fallthru
    _

// kernel: gpt_forward.13
$region0: #{gpt_forward.13}
  #allocation0 [shape = 'u32[]', space=smem, size = 0x4, offset = 0x4, fixed_abs, tag = 'smem constant byte address 0x4 - core index']
  #allocation1 [shape = 'u32[72,128]{1,0:T(1,128)}', space=vmem, size = 0x9000, scoped, tag = 'internal scratch']
  #allocation2 [shape = 'f32[16,96]{1,0:T(8,128)}', space=vmem, size = 0x2000, scoped, tag = 'scratch operand']
  %s0 = inlined_call_operand.vmem [shape: bf16[16,32], index: 0, kind: input, shape index: {}]
  %s1 = inlined_call_operand.vmem [shape: bf16[32,96], index: 1, kind: input, shape index: {}]
  %s2 = inlined_call_operand.vmem [shape: f32[1,96], index: 2, kind: input, shape index: {}]
  %s3 = inlined_call_operand.vmem [shape: bf16[16,96], index: 3, kind: output, shape index: {}]
  %s4 = sld [smem:[#allocation0]]
  $region30: #{gpt_forward.13} parent=0
    _
  %s6 = ssub.s32 1, %s4
  %s7 = scalar_select 0, %s6, %s4
  // Predicated region
  $region2: #{gpt_forward.13} parent=0 // pred_check
    _
  $region3: #{gpt_forward.13} parent=0 // pred_check_branch
    %9 = sbr.rel (0) target = $region5
  $region4: #{gpt_forward.13} parent=0 // pred_region
    _
  $region5: #{gpt_forward.13} parent=0 // pred_fallthru
    _
  // Predicated region
  $region6: #{gpt_forward.13} parent=0 // pred_check
    _
  $region7: #{gpt_forward.13} parent=0 // pred_check_branch
    %11 = sbr.rel (0) target = $region9
  $region8: #{gpt_forward.13} parent=0 // pred_region
    _
  $region9: #{gpt_forward.13} parent=0 // pred_fallthru
    _
  // Predicated region
  $region10: #{gpt_forward.13} parent=0 // pred_check
    _
  $region11: #{gpt_forward.13} parent=0 // pred_check_branch
    %13 = sbr.rel (0) target = $region13
  $region12: #{gpt_forward.13} parent=0 // pred_region
    _
  $region13: #{gpt_forward.13} parent=0 // pred_fallthru
    _
  %p15 = scmp.eq.s32.totalorder 0, 0
  // Predicated region
  $region14: #{gpt_forward.13} parent=0 // pred_check
    %p16 = pneg %p15
  $region15: #{gpt_forward.13} parent=0 // pred_check_branch
    %18 = sbr.rel (%p16) target = $region17
  $region16: #{gpt_forward.13} parent=0 // pred_region
    %vm19 = vcmask 785408
    %20 = vst.msk [vmem:[#allocation2] sm:$0xff] %vm19, 0.0
    %21 = vst.msk [vmem:[#allocation2 + $0x8] sm:$0xff] %vm19, 0.0
  $region17: #{gpt_forward.13} parent=0 // pred_fallthru
    _
  %v22 = vld [vmem:[#allocation2] sm:$0xff]
  %v23 = vld [vmem:[#allocation2 + $0x8] sm:$0xff]
  %v24 = vld [vmem:[%s0] sm:$0xf]
  %v25 = vld [vmem:[%s0 + $0x4] sm:$0xf]
  %v26 = vld [vmem:[%s1] sm:$0xf]
  %v27 = vld [vmem:[%s1 + $0x4] sm:$0xf]
  %v28 = vld [vmem:[%s1 + $0x8] sm:$0xf]
  %v29 = vld [vmem:[%s1 + $0xc] sm:$0xf]
  %v32 = vunpack.c.l.b16 %v24
  %v33 = vunpack.c.l.b16 %v25
  %v34 = vpack.c.b16 %v33, %v32
  %v39 = vunpack.c.l.b16 %v26
  %v40 = vunpack.c.l.b16 %v27
  %v41 = vunpack.c.l.b16 %v28
  %v42 = vunpack.c.l.b16 %v29
  %v43 = vpack.c.b16 %v40, %v39
  %v44 = vpack.c.b16 %v42, %v41
  %vm47 = vcmask 261120
  %v49 = vsel %vm47, %v34, 0
  %51 = vmatpush.bf16.msra.mxu0 0
  %52 = vmatpush.bf16.msra.mxu0 0
  %53 = vmatpush.bf16.msra.mxu0 0
  %54 = vmatpush.bf16.msra.mxu0 0
  %55 = vmatpush.bf16.msra.mxu0 0
  %56 = vmatpush.bf16.msra.mxu0 0
  %57 = vmatpush.bf16.msra.mxu0 %v44
  %58 = vmatpush.bf16.msra.mxu0 %v43
  %59 = vmatmul.bf16.gmra.mxu0 %v49
  %v60 = vpop.f32.mrf.mxu0
  %v61 = vadd.f32 0.0, %v60
  %v62 = vpop.f32.mrf.mxu0
  %v63 = vadd.f32 0.0, %v62
  %64 = vdwg.mxu0
  %v65 = vadd.f32 %v22, %v61
  %v66 = vadd.f32 %v23, %v63
  %vm67 = vcmask 785408
  %68 = vst.msk [vmem:[#allocation2] sm:$0xff] %vm67, %v65
  %69 = vst.msk [vmem:[#allocation2 + $0x8] sm:$0xff] %vm67, %v66
  // Predicated region
  $region18: #{gpt_forward.13} parent=0 // pred_check
    %p70 = pneg %p15
  $region19: #{gpt_forward.13} parent=0 // pred_check_branch
    %72 = sbr.rel (%p70) target = $region21
  $region20: #{gpt_forward.13} parent=0 // pred_region
    %v73 = vld [vmem:[#allocation2] sm:$0xff]
    %v74 = vld [vmem:[#allocation2 + $0x8] sm:$0xff]
    %v75 = vld [vmem:[%s2] sm:$0x1]
    %v77 = vperm.slane %v75, 0
    %v79 = vadd.f32 %v73, %v77
    %v80 = vadd.f32 %v74, %v77
    %v81 = vpack.c.bf16 %v79, %v79
    %v82 = vpack.c.bf16 %v80, %v80
    %vm83 = vcmask 781312
    %84 = vst.msk [vmem:[%s3] sm:$0xf] %vm83, %v81
    %85 = vst.msk [vmem:[%s3 + $0x4] sm:$0xf] %vm83, %v82
  $region21: #{gpt_forward.13} parent=0 // pred_fallthru
    _
  // Predicated region
  $region22: #{gpt_forward.13} parent=0 // pred_check
    _
  $region23: #{gpt_forward.13} parent=0 // pred_check_branch
    %87 = sbr.rel (0) target = $region25
  $region24: #{gpt_forward.13} parent=0 // pred_region
    _
  $region25: #{gpt_forward.13} parent=0 // pred_fallthru
    _
  // Predicated region
  $region26: #{gpt_forward.13} parent=0 // pred_check
    _
  $region27: #{gpt_forward.13} parent=0 // pred_check_branch
    %89 = sbr.rel (0) target = $region29
  $region28: #{gpt_forward.13} parent=0 // pred_region
    _
  $region29: #{gpt_forward.13} parent=0 // pred_fallthru
    _

// kernel: gpt_forward.15
$region0: #{gpt_forward.15}
  #allocation0 [shape = 'u32[]', space=smem, size = 0x4, offset = 0x4, fixed_abs, tag = 'smem constant byte address 0x4 - core index']
  #allocation1 [shape = 'u32[72,128]{1,0:T(1,128)}', space=vmem, size = 0x9000, scoped, tag = 'internal scratch']
  #allocation2 [shape = 'f32[16,32]{1,0:T(8,128)}', space=vmem, size = 0x2000, scoped, tag = 'scratch operand']
  %s0 = inlined_call_operand.vmem [shape: bf16[16,32], index: 0, kind: input, shape index: {}]
  %s1 = inlined_call_operand.vmem [shape: bf16[32,32], index: 1, kind: input, shape index: {}]
  %s2 = inlined_call_operand.vmem [shape: f32[1,32], index: 2, kind: input, shape index: {}]
  %s3 = inlined_call_operand.vmem [shape: f32[16,32], index: 3, kind: input, shape index: {}]
  %s4 = inlined_call_operand.vmem [shape: f32[1,32], index: 4, kind: input, shape index: {}]
  %s5 = inlined_call_operand.vmem [shape: f32[1,32], index: 5, kind: input, shape index: {}]
  %s6 = inlined_call_operand.vmem [shape: f32[16,32], index: 6, kind: output, shape index: {0}]
  %s7 = inlined_call_operand.vmem [shape: bf16[16,32], index: 7, kind: output, shape index: {1}]
  %8 = xla_tuple %s6, %s7
  %s9 = sld [smem:[#allocation0]]
  $region50: #{gpt_forward.15} parent=0
    _
  %s11 = ssub.s32 1, %s9
  %s12 = scalar_select 0, %s11, %s9
  // Predicated region
  $region2: #{gpt_forward.15} parent=0 // pred_check
    _
  $region3: #{gpt_forward.15} parent=0 // pred_check_branch
    %14 = sbr.rel (0) target = $region5
  $region4: #{gpt_forward.15} parent=0 // pred_region
    _
  $region5: #{gpt_forward.15} parent=0 // pred_fallthru
    _
  // Predicated region
  $region6: #{gpt_forward.15} parent=0 // pred_check
    _
  $region7: #{gpt_forward.15} parent=0 // pred_check_branch
    %16 = sbr.rel (0) target = $region9
  $region8: #{gpt_forward.15} parent=0 // pred_region
    _
  $region9: #{gpt_forward.15} parent=0 // pred_fallthru
    _
  // Predicated region
  $region10: #{gpt_forward.15} parent=0 // pred_check
    _
  $region11: #{gpt_forward.15} parent=0 // pred_check_branch
    %18 = sbr.rel (0) target = $region13
  $region12: #{gpt_forward.15} parent=0 // pred_region
    _
  $region13: #{gpt_forward.15} parent=0 // pred_fallthru
    _
  // Predicated region
  $region14: #{gpt_forward.15} parent=0 // pred_check
    _
  $region15: #{gpt_forward.15} parent=0 // pred_check_branch
    %20 = sbr.rel (0) target = $region17
  $region16: #{gpt_forward.15} parent=0 // pred_region
    _
  $region17: #{gpt_forward.15} parent=0 // pred_fallthru
    _
  // Predicated region
  $region18: #{gpt_forward.15} parent=0 // pred_check
    _
  $region19: #{gpt_forward.15} parent=0 // pred_check_branch
    %22 = sbr.rel (0) target = $region21
  $region20: #{gpt_forward.15} parent=0 // pred_region
    _
  $region21: #{gpt_forward.15} parent=0 // pred_fallthru
    _
  // Predicated region
  $region22: #{gpt_forward.15} parent=0 // pred_check
    _
  $region23: #{gpt_forward.15} parent=0 // pred_check_branch
    %24 = sbr.rel (0) target = $region25
  $region24: #{gpt_forward.15} parent=0 // pred_region
    _
  $region25: #{gpt_forward.15} parent=0 // pred_fallthru
    _
  %p26 = scmp.eq.s32.totalorder 0, 0
  // Predicated region
  $region26: #{gpt_forward.15} parent=0 // pred_check
    %p27 = pneg %p26
  $region27: #{gpt_forward.15} parent=0 // pred_check_branch
    %29 = sbr.rel (%p27) target = $region29
  $region28: #{gpt_forward.15} parent=0 // pred_region
    %vm30 = vcmask 261120
    %31 = vst.msk [vmem:[#allocation2] sm:$0xff] %vm30, 0.0
    %32 = vst.msk [vmem:[#allocation2 + $0x8] sm:$0xff] %vm30, 0.0
  $region29: #{gpt_forward.15} parent=0 // pred_fallthru
    _
  %v33 = vld [vmem:[#allocation2] sm:$0xff]
  %v34 = vld [vmem:[#allocation2 + $0x8] sm:$0xff]
  %v35 = vld [vmem:[%s0] sm:$0xf]
  %v36 = vld [vmem:[%s0 + $0x4] sm:$0xf]
  %v37 = vld [vmem:[%s1] sm:$0xf]
  %v38 = vld [vmem:[%s1 + $0x4] sm:$0xf]
  %v39 = vld [vmem:[%s1 + $0x8] sm:$0xf]
  %v40 = vld [vmem:[%s1 + $0xc] sm:$0xf]
  %v43 = vunpack.c.l.b16 %v35
  %v44 = vunpack.c.l.b16 %v36
  %v45 = vpack.c.b16 %v44, %v43
  %v50 = vunpack.c.l.b16 %v37
  %v51 = vunpack.c.l.b16 %v38
  %v52 = vunpack.c.l.b16 %v39
  %v53 = vunpack.c.l.b16 %v40
  %v54 = vpack.c.b16 %v51, %v50
  %v55 = vpack.c.b16 %v53, %v52
  %vm58 = vcmask 261120
  %v60 = vsel %vm58, %v45, 0
  %62 = vmatpush.bf16.msra.mxu0 0
  %63 = vmatpush.bf16.msra.mxu0 0
  %64 = vmatpush.bf16.msra.mxu0 0
  %65 = vmatpush.bf16.msra.mxu0 0
  %66 = vmatpush.bf16.msra.mxu0 0
  %67 = vmatpush.bf16.msra.mxu0 0
  %68 = vmatpush.bf16.msra.mxu0 %v55
  %69 = vmatpush.bf16.msra.mxu0 %v54
  %70 = vmatmul.bf16.gmra.mxu0 %v60
  %v71 = vpop.f32.mrf.mxu0
  %v72 = vadd.f32 0.0, %v71
  %v73 = vpop.f32.mrf.mxu0
  %v74 = vadd.f32 0.0, %v73
  %75 = vdwg.mxu0
  %v76 = vadd.f32 %v33, %v72
  %v77 = vadd.f32 %v34, %v74
  %78 = vst.msk [vmem:[#allocation2] sm:$0xff] %vm58, %v76
  %79 = vst.msk [vmem:[#allocation2 + $0x8] sm:$0xff] %vm58, %v77
  // Predicated region
  $region30: #{gpt_forward.15} parent=0 // pred_check
    %p80 = pneg %p26
  $region31: #{gpt_forward.15} parent=0 // pred_check_branch
    %82 = sbr.rel (%p80) target = $region33
  $region32: #{gpt_forward.15} parent=0 // pred_region
    %v83 = vld [vmem:[#allocation2] sm:$0xff]
    %v84 = vld [vmem:[#allocation2 + $0x8] sm:$0xff]
    %v85 = vld [vmem:[%s2] sm:$0x1]
    %v87 = vperm.slane %v85, 0
    %v89 = vadd.f32 %v83, %v87
    %v90 = vadd.f32 %v84, %v87
    %v91 = vld [vmem:[%s3] sm:$0xff]
    %v92 = vld [vmem:[%s3 + $0x8] sm:$0xff]
    %v93 = vadd.f32 %v89, %v91
    %v94 = vadd.f32 %v90, %v92
    %95 = vst.msk [vmem:[%s6] sm:$0xff] %vm58, %v93
    %96 = vst.msk [vmem:[%s6 + $0x8] sm:$0xff] %vm58, %v94
    %v97 = vsel %vm58, %v93, 0.0
    %98 = vadd.xlane.f32.xlu0 %v97
    %v99 = vpop.xlane.xlu0 %98
    %v100 = vsel %vm58, %v94, 0.0
    %101 = vadd.xlane.f32.xlu0 %v100
    %v102 = vpop.xlane.xlu0 %101
    %v103 = vrcp.pop 32.0
    %v104 = vmul.f32 32.0, %v103
    %v105 = vsub.f32 1.0, %v104
    %v106 = vmul.f32 %v103, %v105
    %v107 = vadd.f32 %v103, %v106
    %vm108 = vweird.f32 %v103
    %v109 = vsel %vm108, %v103, %v107
    %v110 = vmul.f32 %v99, %v109
    %v111 = vmul.f32 %v102, %v109
    %v112 = vsub.f32 %v93, %v110
    %v113 = vsub.f32 %v94, %v111
    %v114 = vmul.f32 %v112, %v112
    %v115 = vmul.f32 %v113, %v113
    %v116 = vsel %vm58, %v114, 0.0
    %117 = vadd.xlane.f32.xlu0 %v116
    %v118 = vpop.xlane.xlu0 %117
    %v119 = vsel %vm58, %v115, 0.0
    %120 = vadd.xlane.f32.xlu0 %v119
    %v121 = vpop.xlane.xlu0 %120
    %v122 = vmul.f32 %v118, %v109
    %v123 = vmul.f32 %v121, %v109
    %v124 = vadd.f32 %v122, 1e-05
    %v125 = vadd.f32 %v123, 1e-05
    %v126 = vrsqrt.pop %v124
    %v127 = vmul.f32 %v126, %v124
    %v128 = vmul.f32 %v127, %v126
    %v129 = vmul.f32 0.5, %v128
    %v130 = vsub.f32 1.5, %v129
    %v131 = vmul.f32 %v126, %v130
    %vm132 = vweird.f32 %v124
    %vm133 = vweird.f32 %v126
    %vm134 = vmor %vm132, %vm133
    %v135 = vsel %vm134, %v126, %v131
    %v136 = vrsqrt.pop %v125
    %v137 = vmul.f32 %v136, %v125
    %v138 = vmul.f32 %v137, %v136
    %v139 = vmul.f32 0.5, %v138
    %v140 = vsub.f32 1.5, %v139
    %v141 = vmul.f32 %v136, %v140
    %vm142 = vweird.f32 %v125
    %vm143 = vweird.f32 %v136
    %vm144 = vmor %vm142, %vm143
    %v145 = vsel %vm144, %v136, %v141
    %v146 = vmul.f32 %v112, %v135
    %v147 = vmul.f32 %v113, %v145
    %v148 = vld [vmem:[%s4] sm:$0x1]
    %v150 = vperm.slane %v148, 0
    %v152 = vmul.f32 %v146, %v150
    %v153 = vmul.f32 %v147, %v150
    %v154 = vld [vmem:[%s5] sm:$0x1]
    %v156 = vperm.slane %v154, 0
    %v158 = vadd.f32 %v152, %v156
    %v159 = vadd.f32 %v153, %v156
    %v160 = vpack.c.bf16 %v158, %v158
    %v161 = vpack.c.bf16 %v159, %v159
    %vm162 = vcmask 257024
    %163 = vst.msk [vmem:[%s7] sm:$0xf] %vm162, %v160
    %164 = vst.msk [vmem:[%s7 + $0x4] sm:$0xf] %vm162, %v161
  $region33: #{gpt_forward.15} parent=0 // pred_fallthru
    _
  // Predicated region
  $region34: #{gpt_forward.15} parent=0 // pred_check
    _
  $region35: #{gpt_forward.15} parent=0 // pred_check_branch
    %166 = sbr.rel (0) target = $region37
  $region36: #{gpt_forward.15} parent=0 // pred_region
    _
  $region37: #{gpt_forward.15} parent=0 // pred_fallthru
    _
  // Predicated region
  $region38: #{gpt_forward.15} parent=0 // pred_check
    _
  $region39: #{gpt_forward.15} parent=0 // pred_check_branch
    %168 = sbr.rel (0) target = $region41
  $region40: #{gpt_forward.15} parent=0 // pred_region
    _
  $region41: #{gpt_forward.15} parent=0 // pred_fallthru
    _
  // Predicated region
  $region42: #{gpt_forward.15} parent=0 // pred_check
    _
  $region43: #{gpt_forward.15} parent=0 // pred_check_branch
    %170 = sbr.rel (0) target = $region45
  $region44: #{gpt_forward.15} parent=0 // pred_region
    _
  $region45: #{gpt_forward.15} parent=0 // pred_fallthru
    _
  // Predicated region
  $region46: #{gpt_forward.15} parent=0 // pred_check
    _
  $region47: #{gpt_forward.15} parent=0 // pred_check_branch
    %172 = sbr.rel (0) target = $region49
  $region48: #{gpt_forward.15} parent=0 // pred_region
    _
  $region49: #{gpt_forward.15} parent=0 // pred_fallthru
    _

// kernel: gpt_forward.14
$region0: #{gpt_forward.14}
  #allocation0 [shape = 'u32[]', space=smem, size = 0x4, offset = 0x4, fixed_abs, tag = 'smem constant byte address 0x4 - core index']
  #allocation1 [shape = 'u32[72,128]{1,0:T(1,128)}', space=vmem, size = 0x9000, scoped, tag = 'internal scratch']
  %s0 = inlined_call_operand.vmem [shape: bf16[2,8,96], index: 0, kind: input, shape index: {}]
  %s1 = inlined_call_operand.vmem [shape: bf16[2,8,32], index: 1, kind: output, shape index: {}]
  %s2 = sld [smem:[#allocation0]]
  $region37: #{gpt_forward.14} parent=0
    _
  %s4 = ssub.s32 1, %s2
  %s5 = scalar_select 0, %s4, %s2
  loop: start=0, step=1, limit=4
  $region2: #{gpt_forward.14} parent=0 // loop_pre_header
    _
  $region3: #{gpt_forward.14} parent=0 // loop_header
    %s7 = sphi 0, %s11
    %p8 = scmp.ge.s32.totalorder %s7, 4
    %s17 = sphi 0, %s19
    %s20 = sphi 0, %s17
    %s21 = sphi 0, %s20
    %s37 = sphi 0, %s21
    %s43 = sphi 0, %s45
    %s46 = sphi 0, %s43
    %s47 = sphi 0, %s46
    %s63 = sphi 0, %s47
  $region4: #{gpt_forward.14} parent=0 // loop_header_branch
    %10 = sbr.rel (%p8) target = $region8
  $region5: #{gpt_forward.14} parent=0 // loop_body
    %s12 = ssub.s32 %s7, 1
    %s13 = ssub.s32 %s7, 2
    %s14 = sadd.s32 %s7, 1
    %s15 = ssub.s32 %s7, %s14
    %p16 = scmp.eq.s32.totalorder %s15, 0
    %s18 = sadd.s32 %s17, 1
    %s19 = scalar_select %p16, %s17, %s18
    %p22 = pneg %p16
    %p23 = scmp.eq.s32.totalorder %s7, 1
    %p24 = por %p22, %p23
    %p25 = scmp.ne.s32.totalorder %s17, %s20
    %p26 = scmp.eq.s32.totalorder %s7, 0
    %p27 = por %p25, %p26
    %p28 = scmp.ne.s32.totalorder %s17, %s20
    %p29 = scmp.eq.s32.totalorder %s12, 1
    %p30 = por %p28, %p29
    %p31 = scmp.ne.s32.totalorder %s20, %s21
    %p32 = scmp.eq.s32.totalorder %s12, 0
    %p33 = por %p31, %p32
    %p34 = scmp.ne.s32.totalorder %s20, %s21
    %p35 = scmp.eq.s32.totalorder %s13, 1
    %p36 = por %p34, %p35
    %p38 = scmp.ne.s32.totalorder %s21, %s37
    %p39 = scmp.eq.s32.totalorder %s13, 0
    %p40 = por %p38, %p39
    %s41 = ssub.s32 %s7, %s14
    %p42 = scmp.eq.s32.totalorder %s41, 0
    %s44 = sadd.s32 %s43, 1
    %s45 = scalar_select %p42, %s43, %s44
    %p48 = pneg %p42
    %p49 = scmp.eq.s32.totalorder %s7, 1
    %p50 = por %p48, %p49
    %p51 = scmp.ne.s32.totalorder %s43, %s46
    %p52 = scmp.eq.s32.totalorder %s7, 0
    %p53 = por %p51, %p52
    %p54 = scmp.ne.s32.totalorder %s43, %s46
    %p55 = scmp.eq.s32.totalorder %s12, 1
    %p56 = por %p54, %p55
    %p57 = scmp.ne.s32.totalorder %s46, %s47
    %p58 = scmp.eq.s32.totalorder %s12, 0
    %p59 = por %p57, %p58
    %p60 = scmp.ne.s32.totalorder %s46, %s47
    %p61 = scmp.eq.s32.totalorder %s13, 1
    %p62 = por %p60, %p61
    %p64 = scmp.ne.s32.totalorder %s47, %s63
    %p65 = scmp.eq.s32.totalorder %s13, 0
    %p66 = por %p64, %p65
    %p67 = scmp.le.s32.totalorder 1, %s7
    %p68 = scmp.lt.s32.totalorder %s7, 3
    %p69 = pnand %p67, %p68
    %p70 = pneg %p69
    // Predicated region
    $region9: #{gpt_forward.14} parent=5 // pred_check
      _
    $region10: #{gpt_forward.14} parent=5 // pred_check_branch
      %72 = sbr.rel (%p69) target = $region12
    $region11: #{gpt_forward.14} parent=5 // pred_region
      %s73 = ssub.s32 %s7, 1
    $region12: #{gpt_forward.14} parent=5 // pred_fallthru
      _
    %p74 = scmp.lt.s32.totalorder %s7, 2
    // Predicated region
    $region13: #{gpt_forward.14} parent=5 // pred_check
      %p75 = pneg %p74
    $region14: #{gpt_forward.14} parent=5 // pred_check_branch
      %77 = sbr.rel (%p75) target = $region16
    $region15: #{gpt_forward.14} parent=5 // pred_region
      // Predicated region
      $region17: #{gpt_forward.14} parent=15 // pred_check
        %p78 = pneg %p27
      $region18: #{gpt_forward.14} parent=15 // pred_check_branch
        %80 = sbr.rel (%p78) target = $region20
      $region19: #{gpt_forward.14} parent=15 // pred_region
        %p81 = scmp.lt.s32.totalorder %s7, 1
        %s82 = scalar_select %p81, %s7, 1
        %s83 = smul.addr %s82, 4
        %s84 = scalar_lea.vmem %s0, %s83
      $region20: #{gpt_forward.14} parent=15 // pred_fallthru
        _
    $region16: #{gpt_forward.14} parent=5 // pred_fallthru
      _
    %p85 = scmp.le.s32.totalorder 1, %s7
    %p86 = scmp.lt.s32.totalorder %s7, 3
    %p87 = pnand %p85, %p86
    %p88 = pneg %p87
    // Predicated region
    $region21: #{gpt_forward.14} parent=5 // pred_check
      _
    $region22: #{gpt_forward.14} parent=5 // pred_check_branch
      %90 = sbr.rel (%p87) target = $region24
    $region23: #{gpt_forward.14} parent=5 // pred_region
      %s91 = ssub.s32 %s7, 1
      %p92 = scmp.lt.s32.totalorder %s12, 1
      %s93 = scalar_select %p92, %s12, 1
      %s94 = smul.addr %s93, 4
      %s95 = scalar_lea.vmem %s0, %s94
      %p96 = pneg %p33
      %p97 = pneg %p30
      %p98 = pneg %p59
      %p99 = pneg %p56
      %p100 = scmp.lt.s32.totalorder %s12, 1
      %s101 = scalar_select %p100, %s12, 1
      %s102 = smul.addr %s101, 4
      %s103 = scalar_lea.vmem %s1, %s102
      %p104 = scmp.lt.s32.totalorder %s12, 1
      %s105 = scalar_select %p104, %s12, 1
      %s106 = smul.addr %s105, 4
      %s107 = scalar_lea.vmem %s0, %s106
      %p108 = scmp.lt.s32.totalorder %s12, 1
      %s109 = scalar_select %p108, %s12, 1
      %s110 = smul.addr %s109, 4
      %s111 = scalar_lea.vmem %s1, %s110
      %v113 = vlaneseq
      %v114 = vshrl.u32 %v113, 7
      %v115 = vlaneseq
      %v116 = vand.u32 %v115, 127
      %vm117 = vcmp.le.s32.totalorder %v116, %v114
      %v118 = vsel %vm117, 0.0, -1e+30
      %v119 = vld [vmem:[%s107] sm:$0xf]
      %v120 = vunpack.c.l.bf16 %v119
      %v121 = vmul.f32 %v120, 0.35351563
      %v122 = vpack.c.bf16 %v121, %v121
      %v124 = vunpack.c.l.b16 %v119
      %v125 = vpack.c.b16 %v124, %v124
      %126 = vrot.lane.b32.xlu0 %v125, 96
      %v127 = vpop.permute.xlu0 %126
      %vm128 = vcmask 64512
      %v130 = vsel %vm128, %v122, 0
      %v133 = vsel %vm128, %v127, 0
      %135 = vmatpush.bf16.xpose.msra.mxu0 0
      %136 = vmatpush.bf16.xpose.msra.mxu0 0
      %137 = vmatpush.bf16.xpose.msra.mxu0 0
      %138 = vmatpush.bf16.xpose.msra.mxu0 0
      %139 = vmatpush.bf16.xpose.msra.mxu0 0
      %140 = vmatpush.bf16.xpose.msra.mxu0 0
      %141 = vmatpush.bf16.xpose.msra.mxu0 0
      %142 = vmatpush.bf16.xpose.msra.mxu0 %v133
      %143 = vmatmul.bf16.gmra.mxu0 %v130
      %v144 = vpop.f32.mrf.mxu0
      %v145 = vadd.f32 %v118, %v144
      %v146 = vpop.f32.mrf.mxu0
      %147 = vdwg.mxu0
      %v148 = vsel %vm128, %v145, -inf
      %149 = vmax.xlane.f32.xlu0 %v148
      %v150 = vpop.xlane.xlu0 %149
      %v151 = vsub.f32 %v145, %v150
      %v152 = vmul.f32 %v151, 1.442695
      %v153 = vpow.pop %v152
      %v154 = vsel %vm128, %v153, 0.0
      %155 = vadd.xlane.f32.xlu0 %v154
      %v156 = vpop.xlane.xlu0 %155
      %v157 = vrcp.pop %v156
      %v158 = vmul.f32 %v153, %v157
      %v159 = vpack.c.bf16 %v158, %v158
      %160 = vrot.lane.b32.xlu0 %v125, 64
      %v161 = vpop.permute.xlu0 %160
      %v163 = vsel %vm128, %v159, 0
      %vm165 = vcmask 1043456
      %v167 = vsel %vm165, %v161, 0
      %169 = vmatpush.bf16.msra.mxu0 0
      %170 = vmatpush.bf16.msra.mxu0 0
      %171 = vmatpush.bf16.msra.mxu0 0
      %172 = vmatpush.bf16.msra.mxu0 0
      %173 = vmatpush.bf16.msra.mxu0 0
      %174 = vmatpush.bf16.msra.mxu0 0
      %175 = vmatpush.bf16.msra.mxu0 0
      %176 = vmatpush.bf16.msra.mxu0 %v167
      %177 = vmatmul.bf16.gmra.mxu0 %v163
      %v178 = vpop.f32.mrf.mxu0
      %v179 = vadd.f32 0.0, %v178
      %v180 = vpop.f32.mrf.mxu0
      %181 = vdwg.mxu0
      %183 = vrot.lane.b32.xlu0 %v122, 120
      %v184 = vpop.permute.xlu0 %183
      %185 = vrot.lane.b32.xlu0 %v125, 88
      %v186 = vpop.permute.xlu0 %185
      %v188 = vsel %vm128, %v184, 0
      %v191 = vsel %vm128, %v186, 0
      %193 = vmatpush.bf16.xpose.msra.mxu0 0
      %194 = vmatpush.bf16.xpose.msra.mxu0 0
      %195 = vmatpush.bf16.xpose.msra.mxu0 0
      %196 = vmatpush.bf16.xpose.msra.mxu0 0
      %197 = vmatpush.bf16.xpose.msra.mxu0 0
      %198 = vmatpush.bf16.xpose.msra.mxu0 0
      %199 = vmatpush.bf16.xpose.msra.mxu0 0
      %200 = vmatpush.bf16.xpose.msra.mxu0 %v191
      %201 = vmatmul.bf16.gmra.mxu0 %v188
      %v202 = vpop.f32.mrf.mxu0
      %v203 = vadd.f32 %v118, %v202
      %v204 = vpop.f32.mrf.mxu0
      %205 = vdwg.mxu0
      %v206 = vsel %vm128, %v203, -inf
      %207 = vmax.xlane.f32.xlu0 %v206
      %v208 = vpop.xlane.xlu0 %207
      %v209 = vsub.f32 %v203, %v208
      %v210 = vmul.f32 %v209, 1.442695
      %v211 = vpow.pop %v210
      %v212 = vsel %vm128, %v211, 0.0
      %213 = vadd.xlane.f32.xlu0 %v212
      %v214 = vpop.xlane.xlu0 %213
      %v215 = vrcp.pop %v214
      %v216 = vmul.f32 %v211, %v215
      %v217 = vpack.c.bf16 %v216, %v216
      %218 = vrot.lane.b32.xlu0 %v125, 56
      %v219 = vpop.permute.xlu0 %218
      %v221 = vsel %vm128, %v217, 0
      %v224 = vsel %vm165, %v219, 0
      %226 = vmatpush.bf16.msra.mxu0 0
      %227 = vmatpush.bf16.msra.mxu0 0
      %228 = vmatpush.bf16.msra.mxu0 0
      %229 = vmatpush.bf16.msra.mxu0 0
      %230 = vmatpush.bf16.msra.mxu0 0
      %231 = vmatpush.bf16.msra.mxu0 0
      %232 = vmatpush.bf16.msra.mxu0 0
      %233 = vmatpush.bf16.msra.mxu0 %v224
      %234 = vmatmul.bf16.gmra.mxu0 %v221
      %v235 = vpop.f32.mrf.mxu0
      %v236 = vadd.f32 0.0, %v235
      %v237 = vpop.f32.mrf.mxu0
      %238 = vdwg.mxu0
      %239 = vrot.lane.b32.xlu0 %v122, 112
      %v240 = vpop.permute.xlu0 %239
      %241 = vrot.lane.b32.xlu0 %v125, 80
      %v242 = vpop.permute.xlu0 %241
      %v244 = vsel %vm128, %v240, 0
      %v247 = vsel %vm128, %v242, 0
      %249 = vmatpush.bf16.xpose.msra.mxu0 0
      %250 = vmatpush.bf16.xpose.msra.mxu0 0
      %251 = vmatpush.bf16.xpose.msra.mxu0 0
      %252 = vmatpush.bf16.xpose.msra.mxu0 0
      %253 = vmatpush.bf16.xpose.msra.mxu0 0
      %254 = vmatpush.bf16.xpose.msra.mxu0 0
      %255 = vmatpush.bf16.xpose.msra.mxu0 0
      %256 = vmatpush.bf16.xpose.msra.mxu0 %v247
      %257 = vmatmul.bf16.gmra.mxu0 %v244
      %v258 = vpop.f32.mrf.mxu0
      %v259 = vadd.f32 %v118, %v258
      %v260 = vpop.f32.mrf.mxu0
      %261 = vdwg.mxu0
      %v262 = vsel %vm128, %v259, -inf
      %263 = vmax.xlane.f32.xlu0 %v262
      %v264 = vpop.xlane.xlu0 %263
      %v265 = vsub.f32 %v259, %v264
      %v266 = vmul.f32 %v265, 1.442695
      %v267 = vpow.pop %v266
      %v268 = vsel %vm128, %v267, 0.0
      %269 = vadd.xlane.f32.xlu0 %v268
      %v270 = vpop.xlane.xlu0 %269
      %v271 = vrcp.pop %v270
      %v272 = vmul.f32 %v267, %v271
      %v273 = vpack.c.bf16 %v272, %v272
      %274 = vrot.lane.b32.xlu0 %v125, 48
      %v275 = vpop.permute.xlu0 %274
      %v277 = vsel %vm128, %v273, 0
      %v280 = vsel %vm165, %v275, 0
      %282 = vmatpush.bf16.msra.mxu0 0
      %283 = vmatpush.bf16.msra.mxu0 0
      %284 = vmatpush.bf16.msra.mxu0 0
      %285 = vmatpush.bf16.msra.mxu0 0
      %286 = vmatpush.bf16.msra.mxu0 0
      %287 = vmatpush.bf16.msra.mxu0 0
      %288 = vmatpush.bf16.msra.mxu0 0
      %289 = vmatpush.bf16.msra.mxu0 %v280
      %290 = vmatmul.bf16.gmra.mxu0 %v277
      %v291 = vpop.f32.mrf.mxu0
      %v292 = vadd.f32 0.0, %v291
      %v293 = vpop.f32.mrf.mxu0
      %294 = vdwg.mxu0
      %295 = vrot.lane.b32.xlu0 %v122, 104
      %v296 = vpop.permute.xlu0 %295
      %297 = vrot.lane.b32.xlu0 %v125, 72
      %v298 = vpop.permute.xlu0 %297
      %v300 = vsel %vm128, %v296, 0
      %v303 = vsel %vm128, %v298, 0
      %305 = vmatpush.bf16.xpose.msra.mxu0 0
      %306 = vmatpush.bf16.xpose.msra.mxu0 0
      %307 = vmatpush.bf16.xpose.msra.mxu0 0
      %308 = vmatpush.bf16.xpose.msra.mxu0 0
      %309 = vmatpush.bf16.xpose.msra.mxu0 0
      %310 = vmatpush.bf16.xpose.msra.mxu0 0
      %311 = vmatpush.bf16.xpose.msra.mxu0 0
      %312 = vmatpush.bf16.xpose.msra.mxu0 %v303
      %313 = vmatmul.bf16.gmra.mxu0 %v300
      %v314 = vpop.f32.mrf.mxu0
      %v315 = vadd.f32 %v118, %v314
      %v316 = vpop.f32.mrf.mxu0
      %317 = vdwg.mxu0
      %v318 = vsel %vm128, %v315, -inf
      %319 = vmax.xlane.f32.xlu0 %v318
      %v320 = vpop.xlane.xlu0 %319
      %v321 = vsub.f32 %v315, %v320
      %v322 = vmul.f32 %v321, 1.442695
      %v323 = vpow.pop %v322
      %v324 = vsel %vm128, %v323, 0.0
      %325 = vadd.xlane.f32.xlu0 %v324
      %v326 = vpop.xlane.xlu0 %325
      %v327 = vrcp.pop %v326
      %v328 = vmul.f32 %v323, %v327
      %v329 = vpack.c.bf16 %v328, %v328
      %330 = vrot.lane.b32.xlu0 %v125, 40
      %v331 = vpop.permute.xlu0 %330
      %v333 = vsel %vm128, %v329, 0
      %v336 = vsel %vm165, %v331, 0
      %338 = vmatpush.bf16.msra.mxu0 0
      %339 = vmatpush.bf16.msra.mxu0 0
      %340 = vmatpush.bf16.msra.mxu0 0
      %341 = vmatpush.bf16.msra.mxu0 0
      %342 = vmatpush.bf16.msra.mxu0 0
      %343 = vmatpush.bf16.msra.mxu0 0
      %344 = vmatpush.bf16.msra.mxu0 0
      %345 = vmatpush.bf16.msra.mxu0 %v336
      %346 = vmatmul.bf16.gmra.mxu0 %v333
      %v347 = vpop.f32.mrf.mxu0
      %v348 = vadd.f32 0.0, %v347
      %v349 = vpop.f32.mrf.mxu0
      %350 = vdwg.mxu0
      %352 = vrot.lane.b32.xlu0 %v236, 8
      %v353 = vpop.permute.xlu0 %352
      %356 = vrot.lane.b32.xlu0 %v292, 16
      %v357 = vpop.permute.xlu0 %356
      %360 = vrot.lane.b32.xlu0 %v348, 24
      %v361 = vpop.permute.xlu0 %360
      %v363 = vsel %vm128, %v179, %v353
      %vm364 = vcmask 130048
      %v365 = vsel %vm364, %v363, %v357
      %vm366 = vcmask 195584
      %v367 = vsel %vm366, %v365, %v361
      %v368 = vpack.c.bf16 %v367, %v367
      %vm369 = vcmask 257024
      %370 = vst.msk [vmem:[%s111] sm:$0xf] %vm369, %v368
      %p371 = scmp.lt.s32.totalorder %s12, 1
      %s372 = scalar_select %p371, %s12, 1
      %s373 = smul.addr %s372, 4
      %s374 = scalar_lea.vmem %s1, %s373
      // Predicated region
      $region25: #{gpt_forward.14} parent=23 // pred_check
        %p375 = pneg %p56
      $region26: #{gpt_forward.14} parent=23 // pred_check_branch
        %377 = sbr.rel (%p375) target = $region28
      $region27: #{gpt_forward.14} parent=23 // pred_region
        _
      $region28: #{gpt_forward.14} parent=23 // pred_fallthru
        _
    $region24: #{gpt_forward.14} parent=5 // pred_fallthru
      _
    %p378 = scmp.le.s32.totalorder 2, %s7
    // Predicated region
    $region29: #{gpt_forward.14} parent=5 // pred_check
      %p379 = pneg %p378
    $region30: #{gpt_forward.14} parent=5 // pred_check_branch
      %381 = sbr.rel (%p379) target = $region32
    $region31: #{gpt_forward.14} parent=5 // pred_region
      %s382 = ssub.s32 %s7, 2
      // Predicated region
      $region33: #{gpt_forward.14} parent=31 // pred_check
        %p383 = pneg %p62
      $region34: #{gpt_forward.14} parent=31 // pred_check_branch
        %385 = sbr.rel (%p383) target = $region36
      $region35: #{gpt_forward.14} parent=31 // pred_region
        %p386 = scmp.lt.s32.totalorder %s13, 1
        %s387 = scalar_select %p386, %s13, 1
        %s388 = smul.addr %s387, 4
        %s389 = scalar_lea.vmem %s1, %s388
      $region36: #{gpt_forward.14} parent=31 // pred_fallthru
        _
    $region32: #{gpt_forward.14} parent=5 // pred_fallthru
      _
  $region6: #{gpt_forward.14} parent=0 // loop_footer
    %s11 = sadd.s32 1, %s7
  $region7: #{gpt_forward.14} parent=0 // loop_footer_branch
    %6 = sbr.rel target = $region3
  $region8: #{gpt_forward.14} parent=0 // loop_exit
    _

// kernel: gpt_forward.16
$region0: #{gpt_forward.16}
  #allocation0 [shape = 'u32[]', space=smem, size = 0x4, offset = 0x4, fixed_abs, tag = 'smem constant byte address 0x4 - core index']
  #allocation1 [shape = 'u32[72,128]{1,0:T(1,128)}', space=vmem, size = 0x9000, scoped, tag = 'internal scratch']
  #allocation2 [shape = 'f32[16,128]{1,0:T(8,128)}', space=vmem, size = 0x2000, scoped, tag = 'scratch operand']
  %s0 = inlined_call_operand.vmem [shape: bf16[16,32], index: 0, kind: input, shape index: {}]
  %s1 = inlined_call_operand.vmem [shape: bf16[32,128], index: 1, kind: input, shape index: {}]
  %s2 = inlined_call_operand.vmem [shape: f32[1,128], index: 2, kind: input, shape index: {}]
  %s3 = inlined_call_operand.vmem [shape: bf16[16,128], index: 3, kind: output, shape index: {}]
  %s4 = sld [smem:[#allocation0]]
  $region30: #{gpt_forward.16} parent=0
    _
  %s6 = ssub.s32 1, %s4
  %s7 = scalar_select 0, %s6, %s4
  // Predicated region
  $region2: #{gpt_forward.16} parent=0 // pred_check
    _
  $region3: #{gpt_forward.16} parent=0 // pred_check_branch
    %9 = sbr.rel (0) target = $region5
  $region4: #{gpt_forward.16} parent=0 // pred_region
    _
  $region5: #{gpt_forward.16} parent=0 // pred_fallthru
    _
  // Predicated region
  $region6: #{gpt_forward.16} parent=0 // pred_check
    _
  $region7: #{gpt_forward.16} parent=0 // pred_check_branch
    %11 = sbr.rel (0) target = $region9
  $region8: #{gpt_forward.16} parent=0 // pred_region
    _
  $region9: #{gpt_forward.16} parent=0 // pred_fallthru
    _
  // Predicated region
  $region10: #{gpt_forward.16} parent=0 // pred_check
    _
  $region11: #{gpt_forward.16} parent=0 // pred_check_branch
    %13 = sbr.rel (0) target = $region13
  $region12: #{gpt_forward.16} parent=0 // pred_region
    _
  $region13: #{gpt_forward.16} parent=0 // pred_fallthru
    _
  %p15 = scmp.eq.s32.totalorder 0, 0
  // Predicated region
  $region14: #{gpt_forward.16} parent=0 // pred_check
    %p16 = pneg %p15
  $region15: #{gpt_forward.16} parent=0 // pred_check_branch
    %18 = sbr.rel (%p16) target = $region17
  $region16: #{gpt_forward.16} parent=0 // pred_region
    %19 = vst [vmem:[#allocation2] sm:$0xff] 0.0
    %20 = vst [vmem:[#allocation2 + $0x8] sm:$0xff] 0.0
  $region17: #{gpt_forward.16} parent=0 // pred_fallthru
    _
  %v21 = vld [vmem:[#allocation2] sm:$0xff]
  %v22 = vld [vmem:[#allocation2 + $0x8] sm:$0xff]
  %v23 = vld [vmem:[%s0] sm:$0xf]
  %v24 = vld [vmem:[%s0 + $0x4] sm:$0xf]
  %v25 = vld [vmem:[%s1] sm:$0xf]
  %v26 = vld [vmem:[%s1 + $0x4] sm:$0xf]
  %v27 = vld [vmem:[%s1 + $0x8] sm:$0xf]
  %v28 = vld [vmem:[%s1 + $0xc] sm:$0xf]
  %v31 = vunpack.c.l.b16 %v23
  %v32 = vunpack.c.l.b16 %v24
  %v33 = vpack.c.b16 %v32, %v31
  %v38 = vunpack.c.l.b16 %v25
  %v39 = vunpack.c.l.b16 %v26
  %v40 = vunpack.c.l.b16 %v27
  %v41 = vunpack.c.l.b16 %v28
  %v42 = vpack.c.b16 %v39, %v38
  %v43 = vpack.c.b16 %v41, %v40
  %vm46 = vcmask 261120
  %v48 = vsel %vm46, %v33, 0
  %50 = vmatpush.bf16.msra.mxu0 0
  %51 = vmatpush.bf16.msra.mxu0 0
  %52 = vmatpush.bf16.msra.mxu0 0
  %53 = vmatpush.bf16.msra.mxu0 0
  %54 = vmatpush.bf16.msra.mxu0 0
  %55 = vmatpush.bf16.msra.mxu0 0
  %56 = vmatpush.bf16.msra.mxu0 %v43
  %57 = vmatpush.bf16.msra.mxu0 %v42
  %58 = vmatmul.bf16.gmra.mxu0 %v48
  %v59 = vpop.f32.mrf.mxu0
  %v60 = vadd.f32 0.0, %v59
  %v61 = vpop.f32.mrf.mxu0
  %v62 = vadd.f32 0.0, %v61
  %63 = vdwg.mxu0
  %v64 = vadd.f32 %v21, %v60
  %v65 = vadd.f32 %v22, %v62
  %66 = vst [vmem:[#allocation2] sm:$0xff] %v64
  %67 = vst [vmem:[#allocation2 + $0x8] sm:$0xff] %v65
  // Predicated region
  $region18: #{gpt_forward.16} parent=0 // pred_check
    %p68 = pneg %p15
  $region19: #{gpt_forward.16} parent=0 // pred_check_branch
    %70 = sbr.rel (%p68) target = $region21
  $region20: #{gpt_forward.16} parent=0 // pred_region
    %v71 = vld [vmem:[#allocation2] sm:$0xff]
    %v72 = vld [vmem:[#allocation2 + $0x8] sm:$0xff]
    %v73 = vld [vmem:[%s2] sm:$0x1]
    %v75 = vperm.slane %v73, 0
    %v77 = vadd.f32 %v71, %v75
    %v78 = vadd.f32 %v72, %v75
    %v79 = vmul.f32 %v77, 0.5
    %v80 = vmul.f32 %v78, 0.5
    %v81 = vmul.f32 %v77, 0.044715
    %v82 = vmul.f32 %v78, 0.044715
    %v83 = vmul.f32 %v81, %v77
    %v84 = vmul.f32 %v82, %v78
    %v85 = vmul.f32 %v83, %v77
    %v86 = vmul.f32 %v84, %v78
    %v87 = vadd.f32 %v77, %v85
    %v88 = vadd.f32 %v78, %v86
    %v89 = vmul.f32 %v87, 0.7978846
    %v90 = vmul.f32 %v88, 0.7978846
    %v91 = vtanh.pop %v89
    %v92 = vtanh.pop %v90
    %v93 = vadd.f32 %v91, 1.0
    %v94 = vadd.f32 %v92, 1.0
    %v95 = vmul.f32 %v79, %v93
    %v96 = vmul.f32 %v80, %v94
    %v97 = vpack.c.bf16 %v95, %v95
    %v98 = vpack.c.bf16 %v96, %v96
    %99 = vst [vmem:[%s3] sm:$0xf] %v97
    %100 = vst [vmem:[%s3 + $0x4] sm:$0xf] %v98
  $region21: #{gpt_forward.16} parent=0 // pred_fallthru
    _
  // Predicated region
  $region22: #{gpt_forward.16} parent=0 // pred_check
    _
  $region23: #{gpt_forward.16} parent=0 // pred_check_branch
    %102 = sbr.rel (0) target = $region25
  $region24: #{gpt_forward.16} parent=0 // pred_region
    _
  $region25: #{gpt_forward.16} parent=0 // pred_fallthru
    _
  // Predicated region
  $region26: #{gpt_forward.16} parent=0 // pred_check
    _
  $region27: #{gpt_forward.16} parent=0 // pred_check_branch
    %104 = sbr.rel (0) target = $region29
  $region28: #{gpt_forward.16} parent=0 // pred_region
    _
  $region29: #{gpt_forward.16} parent=0 // pred_fallthru
    _

// kernel: gpt_forward.17
$region0: #{gpt_forward.17}
  #allocation0 [shape = 'u32[]', space=smem, size = 0x4, offset = 0x4, fixed_abs, tag = 'smem constant byte address 0x4 - core index']
  #allocation1 [shape = 'u32[72,128]{1,0:T(1,128)}', space=vmem, size = 0x9000, scoped, tag = 'internal scratch']
  #allocation2 [shape = 'f32[16,32]{1,0:T(8,128)}', space=vmem, size = 0x2000, scoped, tag = 'scratch operand']
  %s0 = inlined_call_operand.vmem [shape: bf16[16,128], index: 0, kind: input, shape index: {}]
  %s1 = inlined_call_operand.vmem [shape: bf16[128,32], index: 1, kind: input, shape index: {}]
  %s2 = inlined_call_operand.vmem [shape: f32[1,32], index: 2, kind: input, shape index: {}]
  %s3 = inlined_call_operand.vmem [shape: f32[16,32], index: 3, kind: input, shape index: {}]
  %s4 = inlined_call_operand.vmem [shape: f32[1,32], index: 4, kind: input, shape index: {}]
  %s5 = inlined_call_operand.vmem [shape: f32[1,32], index: 5, kind: input, shape index: {}]
  %s6 = inlined_call_operand.vmem [shape: f32[16,32], index: 6, kind: output, shape index: {0}]
  %s7 = inlined_call_operand.vmem [shape: bf16[16,32], index: 7, kind: output, shape index: {1}]
  %8 = xla_tuple %s6, %s7
  %s9 = sld [smem:[#allocation0]]
  $region50: #{gpt_forward.17} parent=0
    _
  %s11 = ssub.s32 1, %s9
  %s12 = scalar_select 0, %s11, %s9
  // Predicated region
  $region2: #{gpt_forward.17} parent=0 // pred_check
    _
  $region3: #{gpt_forward.17} parent=0 // pred_check_branch
    %14 = sbr.rel (0) target = $region5
  $region4: #{gpt_forward.17} parent=0 // pred_region
    _
  $region5: #{gpt_forward.17} parent=0 // pred_fallthru
    _
  // Predicated region
  $region6: #{gpt_forward.17} parent=0 // pred_check
    _
  $region7: #{gpt_forward.17} parent=0 // pred_check_branch
    %16 = sbr.rel (0) target = $region9
  $region8: #{gpt_forward.17} parent=0 // pred_region
    _
  $region9: #{gpt_forward.17} parent=0 // pred_fallthru
    _
  // Predicated region
  $region10: #{gpt_forward.17} parent=0 // pred_check
    _
  $region11: #{gpt_forward.17} parent=0 // pred_check_branch
    %18 = sbr.rel (0) target = $region13
  $region12: #{gpt_forward.17} parent=0 // pred_region
    _
  $region13: #{gpt_forward.17} parent=0 // pred_fallthru
    _
  // Predicated region
  $region14: #{gpt_forward.17} parent=0 // pred_check
    _
  $region15: #{gpt_forward.17} parent=0 // pred_check_branch
    %20 = sbr.rel (0) target = $region17
  $region16: #{gpt_forward.17} parent=0 // pred_region
    _
  $region17: #{gpt_forward.17} parent=0 // pred_fallthru
    _
  // Predicated region
  $region18: #{gpt_forward.17} parent=0 // pred_check
    _
  $region19: #{gpt_forward.17} parent=0 // pred_check_branch
    %22 = sbr.rel (0) target = $region21
  $region20: #{gpt_forward.17} parent=0 // pred_region
    _
  $region21: #{gpt_forward.17} parent=0 // pred_fallthru
    _
  // Predicated region
  $region22: #{gpt_forward.17} parent=0 // pred_check
    _
  $region23: #{gpt_forward.17} parent=0 // pred_check_branch
    %24 = sbr.rel (0) target = $region25
  $region24: #{gpt_forward.17} parent=0 // pred_region
    _
  $region25: #{gpt_forward.17} parent=0 // pred_fallthru
    _
  %p25 = scmp.eq.s32.totalorder 0, 0
  // Predicated region
  $region26: #{gpt_forward.17} parent=0 // pred_check
    %p26 = pneg %p25
  $region27: #{gpt_forward.17} parent=0 // pred_check_branch
    %28 = sbr.rel (%p26) target = $region29
  $region28: #{gpt_forward.17} parent=0 // pred_region
    %vm29 = vcmask 261120
    %30 = vst.msk [vmem:[#allocation2] sm:$0xff] %vm29, 0.0
    %31 = vst.msk [vmem:[#allocation2 + $0x8] sm:$0xff] %vm29, 0.0
  $region29: #{gpt_forward.17} parent=0 // pred_fallthru
    _
  %v32 = vld [vmem:[#allocation2] sm:$0xff]
  %v33 = vld [vmem:[#allocation2 + $0x8] sm:$0xff]
  %v34 = vld [vmem:[%s0] sm:$0xf]
  %v35 = vld [vmem:[%s0 + $0x4] sm:$0xf]
  %v36 = vld [vmem:[%s1] sm:$0xf]
  %v37 = vld [vmem:[%s1 + $0x4] sm:$0xf]
  %v38 = vld [vmem:[%s1 + $0x8] sm:$0xf]
  %v39 = vld [vmem:[%s1 + $0xc] sm:$0xf]
  %v40 = vld [vmem:[%s1 + $0x10] sm:$0xf]
  %v41 = vld [vmem:[%s1 + $0x14] sm:$0xf]
  %v42 = vld [vmem:[%s1 + $0x18] sm:$0xf]
  %v43 = vld [vmem:[%s1 + $0x1c] sm:$0xf]
  %v44 = vld [vmem:[%s1 + $0x20] sm:$0xf]
  %v45 = vld [vmem:[%s1 + $0x24] sm:$0xf]
  %v46 = vld [vmem:[%s1 + $0x28] sm:$0xf]
  %v47 = vld [vmem:[%s1 + $0x2c] sm:$0xf]
  %v48 = vld [vmem:[%s1 + $0x30] sm:$0xf]
  %v49 = vld [vmem:[%s1 + $0x34] sm:$0xf]
  %v50 = vld [vmem:[%s1 + $0x38] sm:$0xf]
  %v51 = vld [vmem:[%s1 + $0x3c] sm:$0xf]
  %v54 = vunpack.c.l.b16 %v34
  %v55 = vunpack.c.l.b16 %v35
  %v56 = vpack.c.b16 %v55, %v54
  %v74 = vunpack.c.l.b16 %v36
  %v75 = vunpack.c.l.b16 %v37
  %v76 = vunpack.c.l.b16 %v38
  %v77 = vunpack.c.l.b16 %v39
  %v78 = vunpack.c.l.b16 %v40
  %v79 = vunpack.c.l.b16 %v41
  %v80 = vunpack.c.l.b16 %v42
  %v81 = vunpack.c.l.b16 %v43
  %v82 = vunpack.c.l.b16 %v44
  %v83 = vunpack.c.l.b16 %v45
  %v84 = vunpack.c.l.b16 %v46
  %v85 = vunpack.c.l.b16 %v47
  %v86 = vunpack.c.l.b16 %v48
  %v87 = vunpack.c.l.b16 %v49
  %v88 = vunpack.c.l.b16 %v50
  %v89 = vunpack.c.l.b16 %v51
  %v90 = vpack.c.b16 %v75, %v74
  %v91 = vpack.c.b16 %v77, %v76
  %v92 = vpack.c.b16 %v79, %v78
  %v93 = vpack.c.b16 %v81, %v80
  %v94 = vpack.c.b16 %v83, %v82
  %v95 = vpack.c.b16 %v85, %v84
  %v96 = vpack.c.b16 %v87, %v86
  %v97 = vpack.c.b16 %v89, %v88
  %106 = vmatpush.bf16.msra.mxu0 %v97
  %107 = vmatpush.bf16.msra.mxu0 %v96
  %108 = vmatpush.bf16.msra.mxu0 %v95
  %109 = vmatpush.bf16.msra.mxu0 %v94
  %110 = vmatpush.bf16.msra.mxu0 %v93
  %111 = vmatpush.bf16.msra.mxu0 %v92
  %112 = vmatpush.bf16.msra.mxu0 %v91
  %113 = vmatpush.bf16.msra.mxu0 %v90
  %114 = vmatmul.bf16.gmra.mxu0 %v56
  %v115 = vpop.f32.mrf.mxu0
  %v116 = vadd.f32 0.0, %v115
  %v117 = vpop.f32.mrf.mxu0
  %v118 = vadd.f32 0.0, %v117
  %119 = vdwg.mxu0
  %v120 = vadd.f32 %v32, %v116
  %v121 = vadd.f32 %v33, %v118
  %vm122 = vcmask 261120
  %123 = vst.msk [vmem:[#allocation2] sm:$0xff] %vm122, %v120
  %124 = vst.msk [vmem:[#allocation2 + $0x8] sm:$0xff] %vm122, %v121
  // Predicated region
  $region30: #{gpt_forward.17} parent=0 // pred_check
    %p125 = pneg %p25
  $region31: #{gpt_forward.17} parent=0 // pred_check_branch
    %127 = sbr.rel (%p125) target = $region33
  $region32: #{gpt_forward.17} parent=0 // pred_region
    %v128 = vld [vmem:[#allocation2] sm:$0xff]
    %v129 = vld [vmem:[#allocation2 + $0x8] sm:$0xff]
    %v130 = vld [vmem:[%s2] sm:$0x1]
    %v132 = vperm.slane %v130, 0
    %v134 = vadd.f32 %v128, %v132
    %v135 = vadd.f32 %v129, %v132
    %v136 = vld [vmem:[%s3] sm:$0xff]
    %v137 = vld [vmem:[%s3 + $0x8] sm:$0xff]
    %v138 = vadd.f32 %v134, %v136
    %v139 = vadd.f32 %v135, %v137
    %140 = vst.msk [vmem:[%s6] sm:$0xff] %vm122, %v138
    %141 = vst.msk [vmem:[%s6 + $0x8] sm:$0xff] %vm122, %v139
    %v142 = vsel %vm122, %v138, 0.0
    %143 = vadd.xlane.f32.xlu0 %v142
    %v144 = vpop.xlane.xlu0 %143
    %v145 = vsel %vm122, %v139, 0.0
    %146 = vadd.xlane.f32.xlu0 %v145
    %v147 = vpop.xlane.xlu0 %146
    %v148 = vrcp.pop 32.0
    %v149 = vmul.f32 32.0, %v148
    %v150 = vsub.f32 1.0, %v149
    %v151 = vmul.f32 %v148, %v150
    %v152 = vadd.f32 %v148, %v151
    %vm153 = vweird.f32 %v148
    %v154 = vsel %vm153, %v148, %v152
    %v155 = vmul.f32 %v144, %v154
    %v156 = vmul.f32 %v147, %v154
    %v157 = vsub.f32 %v138, %v155
    %v158 = vsub.f32 %v139, %v156
    %v159 = vmul.f32 %v157, %v157
    %v160 = vmul.f32 %v158, %v158
    %v161 = vsel %vm122, %v159, 0.0
    %162 = vadd.xlane.f32.xlu0 %v161
    %v163 = vpop.xlane.xlu0 %162
    %v164 = vsel %vm122, %v160, 0.0
    %165 = vadd.xlane.f32.xlu0 %v164
    %v166 = vpop.xlane.xlu0 %165
    %v167 = vmul.f32 %v163, %v154
    %v168 = vmul.f32 %v166, %v154
    %v169 = vadd.f32 %v167, 1e-05
    %v170 = vadd.f32 %v168, 1e-05
    %v171 = vrsqrt.pop %v169
    %v172 = vmul.f32 %v171, %v169
    %v173 = vmul.f32 %v172, %v171
    %v174 = vmul.f32 0.5, %v173
    %v175 = vsub.f32 1.5, %v174
    %v176 = vmul.f32 %v171, %v175
    %vm177 = vweird.f32 %v169
    %vm178 = vweird.f32 %v171
    %vm179 = vmor %vm177, %vm178
    %v180 = vsel %vm179, %v171, %v176
    %v181 = vrsqrt.pop %v170
    %v182 = vmul.f32 %v181, %v170
    %v183 = vmul.f32 %v182, %v181
    %v184 = vmul.f32 0.5, %v183
    %v185 = vsub.f32 1.5, %v184
    %v186 = vmul.f32 %v181, %v185
    %vm187 = vweird.f32 %v170
    %vm188 = vweird.f32 %v181
    %vm189 = vmor %vm187, %vm188
    %v190 = vsel %vm189, %v181, %v186
    %v191 = vmul.f32 %v157, %v180
    %v192 = vmul.f32 %v158, %v190
    %v193 = vld [vmem:[%s4] sm:$0x1]
    %v195 = vperm.slane %v193, 0
    %v197 = vmul.f32 %v191, %v195
    %v198 = vmul.f32 %v192, %v195
    %v199 = vld [vmem:[%s5] sm:$0x1]
    %v201 = vperm.slane %v199, 0
    %v203 = vadd.f32 %v197, %v201
    %v204 = vadd.f32 %v198, %v201
    %v205 = vpack.c.bf16 %v203, %v203
    %v206 = vpack.c.bf16 %v204, %v204
    %vm207 = vcmask 257024
    %208 = vst.msk [vmem:[%s7] sm:$0xf] %vm207, %v205
    %209 = vst.msk [vmem:[%s7 + $0x4] sm:$0xf] %vm207, %v206
  $region33: #{gpt_forward.17} parent=0 // pred_fallthru
    _
  // Predicated region
  $region34: #{gpt_forward.17} parent=0 // pred_check
    _
  $region35: #{gpt_forward.17} parent=0 // pred_check_branch
    %211 = sbr.rel (0) target = $region37
  $region36: #{gpt_forward.17} parent=0 // pred_region
    _
  $region37: #{gpt_forward.17} parent=0 // pred_fallthru
    _
  // Predicated region
  $region38: #{gpt_forward.17} parent=0 // pred_check
    _
  $region39: #{gpt_forward.17} parent=0 // pred_check_branch
    %213 = sbr.rel (0) target = $region41
  $region40: #{gpt_forward.17} parent=0 // pred_region
    _
  $region41: #{gpt_forward.17} parent=0 // pred_fallthru
    _
  // Predicated region
  $region42: #{gpt_forward.17} parent=0 // pred_check
    _
  $region43: #{gpt_forward.17} parent=0 // pred_check_branch
    %215 = sbr.rel (0) target = $region45
  $region44: #{gpt_forward.17} parent=0 // pred_region
    _
  $region45: #{gpt_forward.17} parent=0 // pred_fallthru
    _
  // Predicated region
  $region46: #{gpt_forward.17} parent=0 // pred_check
    _
  $region47: #{gpt_forward.17} parent=0 // pred_check_branch
    %217 = sbr.rel (0) target = $region49
  $region48: #{gpt_forward.17} parent=0 // pred_region
    _
  $region49: #{gpt_forward.17} parent=0 // pred_fallthru
    _

// kernel: gpt_forward.23
$region0: #{gpt_forward.23}
  #allocation0 [shape = 'u32[]', space=smem, size = 0x4, offset = 0x4, fixed_abs, tag = 'smem constant byte address 0x4 - core index']
  #allocation1 [shape = 'u32[72,128]{1,0:T(1,128)}', space=vmem, size = 0x9000, scoped, tag = 'internal scratch']
  #allocation2 [shape = 'f32[16,8]{1,0:T(8,128)}', space=vmem, size = 0x2000, scoped, tag = 'scratch operand']
  %s0 = inlined_call_operand.vmem [shape: bf16[16,32], index: 0, kind: input, shape index: {}]
  %s1 = inlined_call_operand.vmem [shape: bf16[32,8], index: 1, kind: input, shape index: {}]
  %s2 = inlined_call_operand.vmem [shape: f32[1,8], index: 2, kind: input, shape index: {}]
  %s3 = inlined_call_operand.hbm [shape: f32[16,8], index: 3, kind: output, shape index: {}]
  %s4 = sld [smem:[#allocation0]]
  $region30: #{gpt_forward.23} parent=0
    _
  %s6 = ssub.s32 1, %s4
  %s7 = scalar_select 0, %s6, %s4
  $region1: #{gpt_forward.23} parent=0
    #allocation3 [shape = 'u8[8192]{0}', space=vmem, size = 0x2000, scoped, tag = 'output window, operand 0, single buffered']
    #allocation4 [shape = 's32[1]{0}', space=sflag, size = 0x4, scoped, tag = 'scoped memory for gpt_forward.23']
    %8 = vsyncpa [#allocation4], 0
    // Predicated region
    $region2: #{gpt_forward.23} parent=1 // pred_check
      _
    $region3: #{gpt_forward.23} parent=1 // pred_check_branch
      %10 = sbr.rel (0) target = $region5
    $region4: #{gpt_forward.23} parent=1 // pred_region
      _
    $region5: #{gpt_forward.23} parent=1 // pred_fallthru
      _
    // Predicated region
    $region6: #{gpt_forward.23} parent=1 // pred_check
      _
    $region7: #{gpt_forward.23} parent=1 // pred_check_branch
      %12 = sbr.rel (0) target = $region9
    $region8: #{gpt_forward.23} parent=1 // pred_region
      _
    $region9: #{gpt_forward.23} parent=1 // pred_fallthru
      _
    // Predicated region
    $region10: #{gpt_forward.23} parent=1 // pred_check
      _
    $region11: #{gpt_forward.23} parent=1 // pred_check_branch
      %14 = sbr.rel (0) target = $region13
    $region12: #{gpt_forward.23} parent=1 // pred_region
      _
    $region13: #{gpt_forward.23} parent=1 // pred_fallthru
      _
    %p16 = scmp.eq.s32.totalorder 0, 0
    // Predicated region
    $region14: #{gpt_forward.23} parent=1 // pred_check
      %p17 = pneg %p16
    $region15: #{gpt_forward.23} parent=1 // pred_check_branch
      %19 = sbr.rel (%p17) target = $region17
    $region16: #{gpt_forward.23} parent=1 // pred_region
      %vm20 = vcmask 64512
      %21 = vst.msk [vmem:[#allocation2] sm:$0xff] %vm20, 0.0
      %22 = vst.msk [vmem:[#allocation2 + $0x8] sm:$0xff] %vm20, 0.0
    $region17: #{gpt_forward.23} parent=1 // pred_fallthru
      _
    %v23 = vld [vmem:[#allocation2] sm:$0xff]
    %v24 = vld [vmem:[#allocation2 + $0x8] sm:$0xff]
    %v25 = vld [vmem:[%s0] sm:$0xf]
    %v26 = vld [vmem:[%s0 + $0x4] sm:$0xf]
    %v27 = vld [vmem:[%s1] sm:$0xf]
    %v28 = vld [vmem:[%s1 + $0x4] sm:$0xf]
    %v29 = vld [vmem:[%s1 + $0x8] sm:$0xf]
    %v30 = vld [vmem:[%s1 + $0xc] sm:$0xf]
    %v33 = vunpack.c.l.b16 %v25
    %v34 = vunpack.c.l.b16 %v26
    %v35 = vpack.c.b16 %v34, %v33
    %v40 = vunpack.c.l.b16 %v27
    %v41 = vunpack.c.l.b16 %v28
    %v42 = vunpack.c.l.b16 %v29
    %v43 = vunpack.c.l.b16 %v30
    %v44 = vpack.c.b16 %v41, %v40
    %v45 = vpack.c.b16 %v43, %v42
    %vm48 = vcmask 261120
    %v50 = vsel %vm48, %v35, 0
    %52 = vmatpush.bf16.msra.mxu0 0
    %53 = vmatpush.bf16.msra.mxu0 0
    %54 = vmatpush.bf16.msra.mxu0 0
    %55 = vmatpush.bf16.msra.mxu0 0
    %56 = vmatpush.bf16.msra.mxu0 0
    %57 = vmatpush.bf16.msra.mxu0 0
    %58 = vmatpush.bf16.msra.mxu0 %v45
    %59 = vmatpush.bf16.msra.mxu0 %v44
    %60 = vmatmul.bf16.gmra.mxu0 %v50
    %v61 = vpop.f32.mrf.mxu0
    %v62 = vadd.f32 0.0, %v61
    %v63 = vpop.f32.mrf.mxu0
    %v64 = vadd.f32 0.0, %v63
    %65 = vdwg.mxu0
    %v66 = vadd.f32 %v23, %v62
    %v67 = vadd.f32 %v24, %v64
    %vm68 = vcmask 64512
    %69 = vst.msk [vmem:[#allocation2] sm:$0xff] %vm68, %v66
    %70 = vst.msk [vmem:[#allocation2 + $0x8] sm:$0xff] %vm68, %v67
    // Predicated region
    $region18: #{gpt_forward.23} parent=1 // pred_check
      %p71 = pneg %p16
    $region19: #{gpt_forward.23} parent=1 // pred_check_branch
      %73 = sbr.rel (%p71) target = $region21
    $region20: #{gpt_forward.23} parent=1 // pred_region
      %v74 = vld [vmem:[#allocation2] sm:$0xff]
      %v75 = vld [vmem:[#allocation2 + $0x8] sm:$0xff]
      %v76 = vld [vmem:[%s2] sm:$0x1]
      %v78 = vperm.slane %v76, 0
      %v80 = vadd.f32 %v74, %v78
      %v81 = vadd.f32 %v75, %v78
      %82 = vst.msk [vmem:[#allocation3] sm:$0xff] %vm68, %v80
      %83 = vst.msk [vmem:[#allocation3 + $0x8] sm:$0xff] %vm68, %v81
    $region21: #{gpt_forward.23} parent=1 // pred_fallthru
      _
    // Predicated region
    $region22: #{gpt_forward.23} parent=1 // pred_check
      _
    $region23: #{gpt_forward.23} parent=1 // pred_check_branch
      %85 = sbr.rel (0) target = $region25
    $region24: #{gpt_forward.23} parent=1 // pred_region
      %87 = vsyncadd [#allocation4], 0
      %s88 = sshll.u32 [#allocation3], 4
      %s89 = int_to_ptr.vmem [resolvable:$true] %s88
      %s90 = sshll.u32 %s3, 4
      %s91 = int_to_ptr.hbm [resolvable:$true] %s90
      %96 = dma.vmem_to_hbm [thread:$0]  %s89, 256, %s91, [#allocation4], 128, 128, 8
    $region25: #{gpt_forward.23} parent=1 // pred_fallthru
      _
    // Predicated region
    $region26: #{gpt_forward.23} parent=1 // pred_check
      _
    $region27: #{gpt_forward.23} parent=1 // pred_check_branch
      %98 = sbr.rel (0) target = $region29
    $region28: #{gpt_forward.23} parent=1 // pred_region
      %100 = dma.done [#allocation4], 256
    $region29: #{gpt_forward.23} parent=1 // pred_fallthru
      _
    %101 = vsyncpa [#allocation4], 1

// kernel: gpt_forward.22
$region0: #{gpt_forward.22}
  #allocation0 [shape = 'u32[]', space=smem, size = 0x4, offset = 0x4, fixed_abs, tag = 'smem constant byte address 0x4 - core index']
  #allocation1 [shape = 'u32[72,128]{1,0:T(1,128)}', space=vmem, size = 0x9000, scoped, tag = 'internal scratch']
  #allocation2 [shape = 'f32[16,32]{1,0:T(8,128)}', space=vmem, size = 0x2000, scoped, tag = 'scratch operand']
  %s0 = inlined_call_operand.vmem [shape: bf16[16,128], index: 0, kind: input, shape index: {}]
  %s1 = inlined_call_operand.vmem [shape: bf16[128,32], index: 1, kind: input, shape index: {}]
  %s2 = inlined_call_operand.vmem [shape: f32[1,32], index: 2, kind: input, shape index: {}]
  %s3 = inlined_call_operand.vmem [shape: f32[16,32], index: 3, kind: input, shape index: {}]
  %s4 = inlined_call_operand.vmem [shape: f32[1,32], index: 4, kind: input, shape index: {}]
  %s5 = inlined_call_operand.vmem [shape: f32[1,32], index: 5, kind: input, shape index: {}]
  %s6 = inlined_call_operand.hbm [shape: f32[16,32], index: 6, kind: output, shape index: {0}]
  %s7 = inlined_call_operand.vmem [shape: bf16[16,32], index: 7, kind: output, shape index: {1}]
  %8 = xla_tuple %s6, %s7
  %s9 = sld [smem:[#allocation0]]
  $region50: #{gpt_forward.22} parent=0
    _
  %s11 = ssub.s32 1, %s9
  %s12 = scalar_select 0, %s11, %s9
  $region1: #{gpt_forward.22} parent=0
    #allocation3 [shape = 'u8[8192]{0}', space=vmem, size = 0x2000, scoped, tag = 'output window, operand 0, single buffered']
    #allocation4 [shape = 's32[1]{0}', space=sflag, size = 0x4, scoped, tag = 'scoped memory for gpt_forward.22']
    %13 = vsyncpa [#allocation4], 0
    // Predicated region
    $region2: #{gpt_forward.22} parent=1 // pred_check
      _
    $region3: #{gpt_forward.22} parent=1 // pred_check_branch
      %15 = sbr.rel (0) target = $region5
    $region4: #{gpt_forward.22} parent=1 // pred_region
      _
    $region5: #{gpt_forward.22} parent=1 // pred_fallthru
      _
    // Predicated region
    $region6: #{gpt_forward.22} parent=1 // pred_check
      _
    $region7: #{gpt_forward.22} parent=1 // pred_check_branch
      %17 = sbr.rel (0) target = $region9
    $region8: #{gpt_forward.22} parent=1 // pred_region
      _
    $region9: #{gpt_forward.22} parent=1 // pred_fallthru
      _
    // Predicated region
    $region10: #{gpt_forward.22} parent=1 // pred_check
      _
    $region11: #{gpt_forward.22} parent=1 // pred_check_branch
      %19 = sbr.rel (0) target = $region13
    $region12: #{gpt_forward.22} parent=1 // pred_region
      _
    $region13: #{gpt_forward.22} parent=1 // pred_fallthru
      _
    // Predicated region
    $region14: #{gpt_forward.22} parent=1 // pred_check
      _
    $region15: #{gpt_forward.22} parent=1 // pred_check_branch
      %21 = sbr.rel (0) target = $region17
    $region16: #{gpt_forward.22} parent=1 // pred_region
      _
    $region17: #{gpt_forward.22} parent=1 // pred_fallthru
      _
    // Predicated region
    $region18: #{gpt_forward.22} parent=1 // pred_check
      _
    $region19: #{gpt_forward.22} parent=1 // pred_check_branch
      %23 = sbr.rel (0) target = $region21
    $region20: #{gpt_forward.22} parent=1 // pred_region
      _
    $region21: #{gpt_forward.22} parent=1 // pred_fallthru
      _
    // Predicated region
    $region22: #{gpt_forward.22} parent=1 // pred_check
      _
    $region23: #{gpt_forward.22} parent=1 // pred_check_branch
      %25 = sbr.rel (0) target = $region25
    $region24: #{gpt_forward.22} parent=1 // pred_region
      _
    $region25: #{gpt_forward.22} parent=1 // pred_fallthru
      _
    %p26 = scmp.eq.s32.totalorder 0, 0
    // Predicated region
    $region26: #{gpt_forward.22} parent=1 // pred_check
      %p27 = pneg %p26
    $region27: #{gpt_forward.22} parent=1 // pred_check_branch
      %29 = sbr.rel (%p27) target = $region29
    $region28: #{gpt_forward.22} parent=1 // pred_region
      %vm30 = vcmask 261120
      %31 = vst.msk [vmem:[#allocation2] sm:$0xff] %vm30, 0.0
      %32 = vst.msk [vmem:[#allocation2 + $0x8] sm:$0xff] %vm30, 0.0
    $region29: #{gpt_forward.22} parent=1 // pred_fallthru
      _
    %v33 = vld [vmem:[#allocation2] sm:$0xff]
    %v34 = vld [vmem:[#allocation2 + $0x8] sm:$0xff]
    %v35 = vld [vmem:[%s0] sm:$0xf]
    %v36 = vld [vmem:[%s0 + $0x4] sm:$0xf]
    %v37 = vld [vmem:[%s1] sm:$0xf]
    %v38 = vld [vmem:[%s1 + $0x4] sm:$0xf]
    %v39 = vld [vmem:[%s1 + $0x8] sm:$0xf]
    %v40 = vld [vmem:[%s1 + $0xc] sm:$0xf]
    %v41 = vld [vmem:[%s1 + $0x10] sm:$0xf]
    %v42 = vld [vmem:[%s1 + $0x14] sm:$0xf]
    %v43 = vld [vmem:[%s1 + $0x18] sm:$0xf]
    %v44 = vld [vmem:[%s1 + $0x1c] sm:$0xf]
    %v45 = vld [vmem:[%s1 + $0x20] sm:$0xf]
    %v46 = vld [vmem:[%s1 + $0x24] sm:$0xf]
    %v47 = vld [vmem:[%s1 + $0x28] sm:$0xf]
    %v48 = vld [vmem:[%s1 + $0x2c] sm:$0xf]
    %v49 = vld [vmem:[%s1 + $0x30] sm:$0xf]
    %v50 = vld [vmem:[%s1 + $0x34] sm:$0xf]
    %v51 = vld [vmem:[%s1 + $0x38] sm:$0xf]
    %v52 = vld [vmem:[%s1 + $0x3c] sm:$0xf]
    %v55 = vunpack.c.l.b16 %v35
    %v56 = vunpack.c.l.b16 %v36
    %v57 = vpack.c.b16 %v56, %v55
    %v75 = vunpack.c.l.b16 %v37
    %v76 = vunpack.c.l.b16 %v38
    %v77 = vunpack.c.l.b16 %v39
    %v78 = vunpack.c.l.b16 %v40
    %v79 = vunpack.c.l.b16 %v41
    %v80 = vunpack.c.l.b16 %v42
    %v81 = vunpack.c.l.b16 %v43
    %v82 = vunpack.c.l.b16 %v44
    %v83 = vunpack.c.l.b16 %v45
    %v84 = vunpack.c.l.b16 %v46
    %v85 = vunpack.c.l.b16 %v47
    %v86 = vunpack.c.l.b16 %v48
    %v87 = vunpack.c.l.b16 %v49
    %v88 = vunpack.c.l.b16 %v50
    %v89 = vunpack.c.l.b16 %v51
    %v90 = vunpack.c.l.b16 %v52
    %v91 = vpack.c.b16 %v76, %v75
    %v92 = vpack.c.b16 %v78, %v77
    %v93 = vpack.c.b16 %v80, %v79
    %v94 = vpack.c.b16 %v82, %v81
    %v95 = vpack.c.b16 %v84, %v83
    %v96 = vpack.c.b16 %v86, %v85
    %v97 = vpack.c.b16 %v88, %v87
    %v98 = vpack.c.b16 %v90, %v89
    %107 = vmatpush.bf16.msra.mxu0 %v98
    %108 = vmatpush.bf16.msra.mxu0 %v97
    %109 = vmatpush.bf16.msra.mxu0 %v96
    %110 = vmatpush.bf16.msra.mxu0 %v95
    %111 = vmatpush.bf16.msra.mxu0 %v94
    %112 = vmatpush.bf16.msra.mxu0 %v93
    %113 = vmatpush.bf16.msra.mxu0 %v92
    %114 = vmatpush.bf16.msra.mxu0 %v91
    %115 = vmatmul.bf16.gmra.mxu0 %v57
    %v116 = vpop.f32.mrf.mxu0
    %v117 = vadd.f32 0.0, %v116
    %v118 = vpop.f32.mrf.mxu0
    %v119 = vadd.f32 0.0, %v118
    %120 = vdwg.mxu0
    %v121 = vadd.f32 %v33, %v117
    %v122 = vadd.f32 %v34, %v119
    %vm123 = vcmask 261120
    %124 = vst.msk [vmem:[#allocation2] sm:$0xff] %vm123, %v121
    %125 = vst.msk [vmem:[#allocation2 + $0x8] sm:$0xff] %vm123, %v122
    // Predicated region
    $region30: #{gpt_forward.22} parent=1 // pred_check
      %p126 = pneg %p26
    $region31: #{gpt_forward.22} parent=1 // pred_check_branch
      %128 = sbr.rel (%p126) target = $region33
    $region32: #{gpt_forward.22} parent=1 // pred_region
      %v129 = vld [vmem:[#allocation2] sm:$0xff]
      %v130 = vld [vmem:[#allocation2 + $0x8] sm:$0xff]
      %v131 = vld [vmem:[%s2] sm:$0x1]
      %v133 = vperm.slane %v131, 0
      %v135 = vadd.f32 %v129, %v133
      %v136 = vadd.f32 %v130, %v133
      %v137 = vld [vmem:[%s3] sm:$0xff]
      %v138 = vld [vmem:[%s3 + $0x8] sm:$0xff]
      %v139 = vadd.f32 %v135, %v137
      %v140 = vadd.f32 %v136, %v138
      %141 = vst.msk [vmem:[#allocation3] sm:$0xff] %vm123, %v139
      %142 = vst.msk [vmem:[#allocation3 + $0x8] sm:$0xff] %vm123, %v140
      %v143 = vsel %vm123, %v139, 0.0
      %144 = vadd.xlane.f32.xlu0 %v143
      %v145 = vpop.xlane.xlu0 %144
      %v146 = vsel %vm123, %v140, 0.0
      %147 = vadd.xlane.f32.xlu0 %v146
      %v148 = vpop.xlane.xlu0 %147
      %v149 = vrcp.pop 32.0
      %v150 = vmul.f32 32.0, %v149
      %v151 = vsub.f32 1.0, %v150
      %v152 = vmul.f32 %v149, %v151
      %v153 = vadd.f32 %v149, %v152
      %vm154 = vweird.f32 %v149
      %v155 = vsel %vm154, %v149, %v153
      %v156 = vmul.f32 %v145, %v155
      %v157 = vmul.f32 %v148, %v155
      %v158 = vsub.f32 %v139, %v156
      %v159 = vsub.f32 %v140, %v157
      %v160 = vmul.f32 %v158, %v158
      %v161 = vmul.f32 %v159, %v159
      %v162 = vsel %vm123, %v160, 0.0
      %163 = vadd.xlane.f32.xlu0 %v162
      %v164 = vpop.xlane.xlu0 %163
      %v165 = vsel %vm123, %v161, 0.0
      %166 = vadd.xlane.f32.xlu0 %v165
      %v167 = vpop.xlane.xlu0 %166
      %v168 = vmul.f32 %v164, %v155
      %v169 = vmul.f32 %v167, %v155
      %v170 = vadd.f32 %v168, 1e-05
      %v171 = vadd.f32 %v169, 1e-05
      %v172 = vrsqrt.pop %v170
      %v173 = vmul.f32 %v172, %v170
      %v174 = vmul.f32 %v173, %v172
      %v175 = vmul.f32 0.5, %v174
      %v176 = vsub.f32 1.5, %v175
      %v177 = vmul.f32 %v172, %v176
      %vm178 = vweird.f32 %v170
      %vm179 = vweird.f32 %v172
      %vm180 = vmor %vm178, %vm179
      %v181 = vsel %vm180, %v172, %v177
      %v182 = vrsqrt.pop %v171
      %v183 = vmul.f32 %v182, %v171
      %v184 = vmul.f32 %v183, %v182
      %v185 = vmul.f32 0.5, %v184
      %v186 = vsub.f32 1.5, %v185
      %v187 = vmul.f32 %v182, %v186
      %vm188 = vweird.f32 %v171
      %vm189 = vweird.f32 %v182
      %vm190 = vmor %vm188, %vm189
      %v191 = vsel %vm190, %v182, %v187
      %v192 = vmul.f32 %v158, %v181
      %v193 = vmul.f32 %v159, %v191
      %v194 = vld [vmem:[%s4] sm:$0x1]
      %v196 = vperm.slane %v194, 0
      %v198 = vmul.f32 %v192, %v196
      %v199 = vmul.f32 %v193, %v196
      %v200 = vld [vmem:[%s5] sm:$0x1]
      %v202 = vperm.slane %v200, 0
      %v204 = vadd.f32 %v198, %v202
      %v205 = vadd.f32 %v199, %v202
      %v206 = vpack.c.bf16 %v204, %v204
      %v207 = vpack.c.bf16 %v205, %v205
      %vm208 = vcmask 257024
      %209 = vst.msk [vmem:[%s7] sm:$0xf] %vm208, %v206
      %210 = vst.msk [vmem:[%s7 + $0x4] sm:$0xf] %vm208, %v207
    $region33: #{gpt_forward.22} parent=1 // pred_fallthru
      _
    // Predicated region
    $region34: #{gpt_forward.22} parent=1 // pred_check
      _
    $region35: #{gpt_forward.22} parent=1 // pred_check_branch
      %212 = sbr.rel (0) target = $region37
    $region36: #{gpt_forward.22} parent=1 // pred_region
      %214 = vsyncadd [#allocation4], 0
      %s215 = sshll.u32 [#allocation3], 4
      %s216 = int_to_ptr.vmem [resolvable:$true] %s215
      %s217 = sshll.u32 %s6, 4
      %s218 = int_to_ptr.hbm [resolvable:$true] %s217
      %223 = dma.vmem_to_hbm [thread:$0]  %s216, 256, %s218, [#allocation4], 128, 128, 8
    $region37: #{gpt_forward.22} parent=1 // pred_fallthru
      _
    // Predicated region
    $region38: #{gpt_forward.22} parent=1 // pred_check
      _
    $region39: #{gpt_forward.22} parent=1 // pred_check_branch
      %225 = sbr.rel (0) target = $region41
    $region40: #{gpt_forward.22} parent=1 // pred_region
      _
    $region41: #{gpt_forward.22} parent=1 // pred_fallthru
      _
    // Predicated region
    $region42: #{gpt_forward.22} parent=1 // pred_check
      _
    $region43: #{gpt_forward.22} parent=1 // pred_check_branch
      %227 = sbr.rel (0) target = $region45
    $region44: #{gpt_forward.22} parent=1 // pred_region
      %229 = dma.done [#allocation4], 256
    $region45: #{gpt_forward.22} parent=1 // pred_fallthru
      _
    // Predicated region
    $region46: #{gpt_forward.22} parent=1 // pred_check
      _
    $region47: #{gpt_forward.22} parent=1 // pred_check_branch
      %231 = sbr.rel (0) target = $region49
    $region48: #{gpt_forward.22} parent=1 // pred_region
      _
    $region49: #{gpt_forward.22} parent=1 // pred_fallthru
      _
    %232 = vsyncpa [#allocation4], 1

</llo_original>
